<compile_context>
chip_gen: v7x
topology: tpu7x:2x2x1
jax: 0.10.0
libtpu: 0.0.40
codegen_flags: <defaults>
</compile_context>

<pallas_src>
import math
import functools

import jax
import jax.numpy as jnp
from jax import lax
from jax.experimental import pallas as pl
from jax.experimental.pallas import tpu as pltpu


def _layernorm_f32(h, gamma, beta, eps=1e-5):
    mu = jnp.mean(h, axis=-1, keepdims=True)
    var = jnp.mean((h - mu) ** 2, axis=-1, keepdims=True)
    return (h - mu) * lax.rsqrt(var + eps) * gamma + beta


def decoder_layer_kernel(
    xq_ref, xkv_ref, mask_ref,
    wq_ref, bq_ref, wk_ref, bk_ref, wv_ref, bv_ref, wo_ref, bo_ref,
    w1_ref, b1_ref, w2_ref, b2_ref,
    g1_ref, be1_ref, g2_ref, be2_ref,
    out_ref,
    *, num_heads,
):
    # Query-tile rows (residual path) and full-sequence rows (for K/V).
    xq = xq_ref[0].astype(jnp.float32)            # (TQ, D)
    xq_b = xq.astype(jnp.bfloat16)
    xkv_b = xkv_ref[0].astype(jnp.bfloat16)       # (S, D)
    m = mask_ref[0, 0].astype(jnp.float32)        # (TQ, S) additive mask

    TQ, D = xq.shape
    dh = D // num_heads
    scale = 1.0 / math.sqrt(dh)

    # ---- per-head attention; weights are head-split on the LEADING axis so no
    #      lane-dim slicing of activations is needed inside the loop.
    head_outs = []
    for h in range(num_heads):
        # QKV projections: bf16 operands, f32 accumulation (K = D contraction).
        qh = jnp.dot(xq_b, wq_ref[h], preferred_element_type=jnp.float32) + bq_ref[h]
        kh = jnp.dot(xkv_b, wk_ref[h], preferred_element_type=jnp.float32) + bk_ref[h]
        vh = jnp.dot(xkv_b, wv_ref[h], preferred_element_type=jnp.float32) + bv_ref[h]

        # scores = (qh * scale) @ kh^T  (contract over dh, no explicit transpose)
        scores = lax.dot_general(
            (qh * scale).astype(jnp.bfloat16), kh.astype(jnp.bfloat16),
            (((1,), (1,)), ((), ())),
            preferred_element_type=jnp.float32)               # (TQ, S) f32
        scores = scores + m
        scores = scores - jnp.max(scores, axis=-1, keepdims=True)
        p = jnp.exp(scores)                                   # f32 softmax stats
        inv_l = pl.reciprocal(jnp.sum(p, axis=-1, keepdims=True), approx=True)
        p = p * inv_l
        oh = jnp.dot(p.astype(jnp.bfloat16), vh.astype(jnp.bfloat16),
                     preferred_element_type=jnp.float32)      # (TQ, dh)
        head_outs.append(oh)

    # Concatenate heads once, then ONE full-depth output projection.
    attn_cat = jnp.concatenate(head_outs, axis=-1)            # (TQ, D) f32
    attn = jnp.dot(attn_cat.astype(jnp.bfloat16), wo_ref[...],
                   preferred_element_type=jnp.float32) + bo_ref[...]

    # TODO(synk): dropout omitted (inference / eval-mode forward).

    # ---- residual + LayerNorm 1 (f32 statistics) ----
    y1 = _layernorm_f32(xq + attn, g1_ref[...], be1_ref[...])

    # ---- FFN: Linear -> ReLU -> Linear (bf16 matmuls, f32 accumulate) ----
    h1 = jnp.dot(y1.astype(jnp.bfloat16), w1_ref[...],
                 preferred_element_type=jnp.float32) + b1_ref[...]
    h1 = jnp.maximum(h1, 0.0)
    ffn = jnp.dot(h1.astype(jnp.bfloat16), w2_ref[...],
                  preferred_element_type=jnp.float32) + b2_ref[...]

    # ---- residual + LayerNorm 2 ----
    y2 = _layernorm_f32(y1 + ffn, g2_ref[...], be2_ref[...])

    out_ref[0] = y2.astype(out_ref.dtype)


def decoder_layer(x, mask, params, num_heads, *, tq=None,
                  compute_dtype=jnp.bfloat16):
    B, S, D = x.shape
    assert D % num_heads == 0
    dh = D // num_heads
    F = params["w1"].shape[1]
    f32 = jnp.float32

    if tq is None:
        tq = min(S, 256)       # bigger tiles on v5e/v6e; keep headroom on v7x
    assert S % tq == 0, "seq_len must be divisible by the query tile"
    n_q = S // tq

    # Head-split QKV weights -> (H, D, dh); biases -> lane-aligned rows.
    def split_heads(w):
        return w.reshape(D, num_heads, dh).transpose(1, 0, 2).astype(compute_dtype)

    wq_h = split_heads(params["wq"])
    wk_h = split_heads(params["wk"])
    wv_h = split_heads(params["wv"])
    bq_h = params["bq"].reshape(num_heads, 1, dh).astype(f32)
    bk_h = params["bk"].reshape(num_heads, 1, dh).astype(f32)
    bv_h = params["bv"].reshape(num_heads, 1, dh).astype(f32)
    wo = params["wo"].astype(compute_dtype)
    bo = params["bo"].reshape(1, D).astype(f32)
    w1 = params["w1"].astype(compute_dtype)
    b1 = params["b1"].reshape(1, F).astype(f32)
    w2 = params["w2"].astype(compute_dtype)
    b2 = params["b2"].reshape(1, D).astype(f32)
    g1 = params["g1"].reshape(1, D).astype(f32)
    be1 = params["be1"].reshape(1, D).astype(f32)
    g2 = params["g2"].reshape(1, D).astype(f32)
    be2 = params["be2"].reshape(1, D).astype(f32)

    param_list = [wq_h, bq_h, wk_h, bk_h, wv_h, bv_h, wo, bo,
                  w1, b1, w2, b2, g1, be1, g2, be2]

    def full_spec(p):
        nd = p.ndim
        return pl.BlockSpec(p.shape, lambda b, q, _nd=nd: (0,) * _nd)

    in_specs = [
        pl.BlockSpec((1, tq, D), lambda b, q: (b, q, 0)),         # x, query tile
        pl.BlockSpec((1, S, D), lambda b, q: (b, 0, 0)),          # x, full S (K/V)
        pl.BlockSpec((1, 1, tq, S), lambda b, q: (b, 0, q, 0)),   # additive mask
    ] + [full_spec(p) for p in param_list]

    kernel = functools.partial(decoder_layer_kernel, num_heads=num_heads)

    return pl.pallas_call(
        kernel,
        out_shape=jax.ShapeDtypeStruct((B, S, D), x.dtype),
        grid=(B, n_q),
        in_specs=in_specs,
        out_specs=pl.BlockSpec((1, tq, D), lambda b, q: (b, q, 0)),
        compiler_params=pltpu.CompilerParams(
            dimension_semantics=("parallel", "parallel"),
            vmem_limit_bytes=48 * 1024 * 1024),
    )(x, x, mask, *param_list)


# ---------------- pure-JAX reference (mirrors torch semantics) ----------------
def decoder_layer_ref(x, mask, params, num_heads, compute_dtype=jnp.float32):
    B, S, D = x.shape
    dh = D // num_heads
    scale = 1.0 / math.sqrt(dh)
    f32 = jnp.float32

    def mm(a, b):
        return jnp.dot(a.astype(compute_dtype), b.astype(compute_dtype),
                       preferred_element_type=f32)

    def ln(h, g, b, eps=1e-5):
        mu = jnp.mean(h, axis=-1, keepdims=True)
        var = jnp.mean((h - mu) ** 2, axis=-1, keepdims=True)
        return (h - mu) / jnp.sqrt(var + eps) * g + b

    q = mm(x, params["wq"]) + params["bq"]
    k = mm(x, params["wk"]) + params["bk"]
    v = mm(x, params["wv"]) + params["bv"]
    q = q.reshape(B, S, num_heads, dh).transpose(0, 2, 1, 3)
    k = k.reshape(B, S, num_heads, dh).transpose(0, 2, 1, 3)
    v = v.reshape(B, S, num_heads, dh).transpose(0, 2, 1, 3)
    scores = jnp.einsum("bhqd,bhkd->bhqk",
                        q.astype(compute_dtype), k.astype(compute_dtype),
                        preferred_element_type=f32) * scale + mask
    p = jax.nn.softmax(scores, axis=-1)
    o = jnp.einsum("bhqk,bhkd->bhqd",
                   p.astype(compute_dtype), v.astype(compute_dtype),
                   preferred_element_type=f32)
    o = o.transpose(0, 2, 1, 3).reshape(B, S, D)
    attn = mm(o, params["wo"]) + params["bo"]
    y1 = ln(x + attn, params["g1"], params["be1"])
    ffn = mm(jnp.maximum(mm(y1, params["w1"]) + params["b1"], 0.0),
             params["w2"]) + params["b2"]
    return ln(y1 + ffn, params["g2"], params["be2"])


if __name__ == "__main__":
    # batch, seq, d_model, num_heads, d_ff ; query tile -> grid (2, 2)
    B, S, D, H, F = 2, 16, 32, 4, 64
    TQ = 8

    key = jax.random.PRNGKey(0)
    ks = jax.random.split(key, 16)

    def init(k, shape, fan_in):
        return jax.random.normal(k, shape, jnp.float32) / math.sqrt(fan_in)

    params = {
        "wq": init(ks[0], (D, D), D), "bq": init(ks[1], (D,), D),
        "wk": init(ks[2], (D, D), D), "bk": init(ks[3], (D,), D),
        "wv": init(ks[4], (D, D), D), "bv": init(ks[5], (D,), D),
        "wo": init(ks[6], (D, D), D), "bo": init(ks[7], (D,), D),
        "w1": init(ks[8], (D, F), D), "b1": init(ks[9], (F,), D),
        "w2": init(ks[10], (F, D), F), "b2": init(ks[11], (D,), F),
        "g1": jnp.ones((D,), jnp.float32), "be1": jnp.zeros((D,), jnp.float32),
        "g2": jnp.ones((D,), jnp.float32), "be2": jnp.zeros((D,), jnp.float32),
    }

    x = jax.random.normal(ks[12], (B, S, D), jnp.float32)
    # causal additive mask, shape (B, 1, S, S): 0 where allowed, -1e9 where masked
    causal = jnp.where(jnp.tril(jnp.ones((S, S), jnp.bool_)), 0.0, -1e9).astype(jnp.float32)
    mask = jnp.broadcast_to(causal, (B, 1, S, S))

    out = decoder_layer(x, mask, params, H, tq=TQ)
    out = jax.block_until_ready(out)

    # Tight check against a reference that uses the same bf16-operand / f32-accum
    # matmul path (isolates structural bugs from expected bf16 quantization),
    # plus a looser check against the pure-f32 reference semantics.
    ref_bf16 = decoder_layer_ref(x, mask, params, H, compute_dtype=jnp.bfloat16)
    ref_f32 = decoder_layer_ref(x, mask, params, H, compute_dtype=jnp.float32)
    assert jnp.allclose(out, ref_bf16, rtol=2e-2, atol=2e-2), "mismatch vs bf16 reference"
    assert jnp.allclose(out, ref_f32, rtol=1e-1, atol=1e-1), "mismatch vs f32 reference"

    print("KERNEL_OK")
</pallas_src>

<mosaic_0001>
module attributes {stable_mosaic.version = 11 : i64} {
  func.func @decoder_layer_kernel(%arg0: i32, %arg1: i32, %arg2: memref<1x8x32xf32, #tpu.memory_space<vmem>>, %arg3: memref<1x16x32xf32, #tpu.memory_space<vmem>>, %arg4: memref<1x1x8x16xf32, #tpu.memory_space<vmem>>, %arg5: memref<4x32x8xbf16, #tpu.memory_space<vmem>>, %arg6: memref<4x1x8xf32, #tpu.memory_space<vmem>>, %arg7: memref<4x32x8xbf16, #tpu.memory_space<vmem>>, %arg8: memref<4x1x8xf32, #tpu.memory_space<vmem>>, %arg9: memref<4x32x8xbf16, #tpu.memory_space<vmem>>, %arg10: memref<4x1x8xf32, #tpu.memory_space<vmem>>, %arg11: memref<32x32xbf16, #tpu.memory_space<vmem>>, %arg12: memref<1x32xf32, #tpu.memory_space<vmem>>, %arg13: memref<32x64xbf16, #tpu.memory_space<vmem>>, %arg14: memref<1x64xf32, #tpu.memory_space<vmem>>, %arg15: memref<64x32xbf16, #tpu.memory_space<vmem>>, %arg16: memref<1x32xf32, #tpu.memory_space<vmem>>, %arg17: memref<1x32xf32, #tpu.memory_space<vmem>>, %arg18: memref<1x32xf32, #tpu.memory_space<vmem>>, %arg19: memref<1x32xf32, #tpu.memory_space<vmem>>, %arg20: memref<1x32xf32, #tpu.memory_space<vmem>>, %arg21: memref<1x8x32xf32, #tpu.memory_space<vmem>>) attributes {dimension_semantics = [#tpu.dimension_semantics<parallel>, #tpu.dimension_semantics<parallel>], iteration_bounds = array<i64: 2, 2>, scalar_prefetch = 0 : i64, scratch_operands = 0 : i64, tpu.core_type = #tpu.core_type<tc>, window_params = [{transform_indices = @transform_0, window_bounds = array<i64: 1, 8, 32>}, {transform_indices = @transform_1, window_bounds = array<i64: 1, 16, 32>}, {transform_indices = @transform_2, window_bounds = array<i64: 1, 1, 8, 16>}, {pipeline_mode = #tpu.pipeline_mode<synchronous>, transform_indices = @transform_3, window_bounds = array<i64: 4, 32, 8>}, {pipeline_mode = #tpu.pipeline_mode<synchronous>, transform_indices = @transform_4, window_bounds = array<i64: 4, 1, 8>}, {pipeline_mode = #tpu.pipeline_mode<synchronous>, transform_indices = @transform_5, window_bounds = array<i64: 4, 32, 8>}, {pipeline_mode = #tpu.pipeline_mode<synchronous>, transform_indices = @transform_6, window_bounds = array<i64: 4, 1, 8>}, {pipeline_mode = #tpu.pipeline_mode<synchronous>, transform_indices = @transform_7, window_bounds = array<i64: 4, 32, 8>}, {pipeline_mode = #tpu.pipeline_mode<synchronous>, transform_indices = @transform_8, window_bounds = array<i64: 4, 1, 8>}, {pipeline_mode = #tpu.pipeline_mode<synchronous>, transform_indices = @transform_9, window_bounds = array<i64: 32, 32>}, {pipeline_mode = #tpu.pipeline_mode<synchronous>, transform_indices = @transform_10, window_bounds = array<i64: 1, 32>}, {pipeline_mode = #tpu.pipeline_mode<synchronous>, transform_indices = @transform_11, window_bounds = array<i64: 32, 64>}, {pipeline_mode = #tpu.pipeline_mode<synchronous>, transform_indices = @transform_12, window_bounds = array<i64: 1, 64>}, {pipeline_mode = #tpu.pipeline_mode<synchronous>, transform_indices = @transform_13, window_bounds = array<i64: 64, 32>}, {pipeline_mode = #tpu.pipeline_mode<synchronous>, transform_indices = @transform_14, window_bounds = array<i64: 1, 32>}, {pipeline_mode = #tpu.pipeline_mode<synchronous>, transform_indices = @transform_15, window_bounds = array<i64: 1, 32>}, {pipeline_mode = #tpu.pipeline_mode<synchronous>, transform_indices = @transform_16, window_bounds = array<i64: 1, 32>}, {pipeline_mode = #tpu.pipeline_mode<synchronous>, transform_indices = @transform_17, window_bounds = array<i64: 1, 32>}, {pipeline_mode = #tpu.pipeline_mode<synchronous>, transform_indices = @transform_18, window_bounds = array<i64: 1, 32>}, {transform_indices = @transform_19, window_bounds = array<i64: 1, 8, 32>}]} {
    %c0 = arith.constant 0 : index
    %c0_0 = arith.constant 0 : index
    %c0_1 = arith.constant 0 : index
    %0 = vector.load %arg2[%c0, %c0_0, %c0_1] : memref<1x8x32xf32, #tpu.memory_space<vmem>>, vector<1x8x32xf32>
    %1 = vector.shape_cast %0 : vector<1x8x32xf32> to vector<8x32xf32>
    %2 = arith.truncf %1 : vector<8x32xf32> to vector<8x32xbf16>
    %c0_2 = arith.constant 0 : index
    %c0_3 = arith.constant 0 : index
    %c0_4 = arith.constant 0 : index
    %3 = vector.load %arg3[%c0_2, %c0_3, %c0_4] : memref<1x16x32xf32, #tpu.memory_space<vmem>>, vector<1x16x32xf32>
    %4 = vector.shape_cast %3 : vector<1x16x32xf32> to vector<16x32xf32>
    %5 = arith.truncf %4 : vector<16x32xf32> to vector<16x32xbf16>
    %c0_5 = arith.constant 0 : index
    %c0_6 = arith.constant 0 : index
    %c0_7 = arith.constant 0 : index
    %c0_8 = arith.constant 0 : index
    %6 = vector.load %arg4[%c0_5, %c0_6, %c0_7, %c0_8] : memref<1x1x8x16xf32, #tpu.memory_space<vmem>>, vector<1x1x8x16xf32>
    %7 = vector.shape_cast %6 : vector<1x1x8x16xf32> to vector<8x16xf32>
    %c0_9 = arith.constant 0 : index
    %c0_10 = arith.constant 0 : index
    %c0_11 = arith.constant 0 : index
    %8 = vector.load %arg5[%c0_9, %c0_10, %c0_11] : memref<4x32x8xbf16, #tpu.memory_space<vmem>>, vector<1x32x8xbf16>
    %9 = vector.shape_cast %8 : vector<1x32x8xbf16> to vector<32x8xbf16>
    %cst = arith.constant dense<0.000000e+00> : vector<8x8xf32>
    %10 = tpu.matmul %2, %9, %cst {dimension_numbers = #tpu.dot_dimension_numbers<[1], [0], [0], [1], [0, 0, 1, 1], [], []>} : vector<8x32xbf16>, vector<32x8xbf16>, vector<8x8xf32> -> vector<8x8xf32>
    %c0_12 = arith.constant 0 : index
    %c0_13 = arith.constant 0 : index
    %c0_14 = arith.constant 0 : index
    %11 = vector.load %arg6[%c0_12, %c0_13, %c0_14] : memref<4x1x8xf32, #tpu.memory_space<vmem>>, vector<1x1x8xf32>
    %12 = vector.shape_cast %11 : vector<1x1x8xf32> to vector<1x8xf32>
    %13 = vector.broadcast %12 : vector<1x8xf32> to vector<8x8xf32>
    %14 = arith.addf %10, %13 : vector<8x8xf32>
    %c0_15 = arith.constant 0 : index
    %c0_16 = arith.constant 0 : index
    %c0_17 = arith.constant 0 : index
    %15 = vector.load %arg7[%c0_15, %c0_16, %c0_17] : memref<4x32x8xbf16, #tpu.memory_space<vmem>>, vector<1x32x8xbf16>
    %16 = vector.shape_cast %15 : vector<1x32x8xbf16> to vector<32x8xbf16>
    %cst_18 = arith.constant dense<0.000000e+00> : vector<16x8xf32>
    %17 = tpu.matmul %5, %16, %cst_18 {dimension_numbers = #tpu.dot_dimension_numbers<[1], [0], [0], [1], [0, 0, 1, 1], [], []>} : vector<16x32xbf16>, vector<32x8xbf16>, vector<16x8xf32> -> vector<16x8xf32>
    %c0_19 = arith.constant 0 : index
    %c0_20 = arith.constant 0 : index
    %c0_21 = arith.constant 0 : index
    %18 = vector.load %arg8[%c0_19, %c0_20, %c0_21] : memref<4x1x8xf32, #tpu.memory_space<vmem>>, vector<1x1x8xf32>
    %19 = vector.shape_cast %18 : vector<1x1x8xf32> to vector<1x8xf32>
    %20 = vector.broadcast %19 : vector<1x8xf32> to vector<16x8xf32>
    %21 = arith.addf %17, %20 : vector<16x8xf32>
    %c0_22 = arith.constant 0 : index
    %c0_23 = arith.constant 0 : index
    %c0_24 = arith.constant 0 : index
    %22 = vector.load %arg9[%c0_22, %c0_23, %c0_24] : memref<4x32x8xbf16, #tpu.memory_space<vmem>>, vector<1x32x8xbf16>
    %23 = vector.shape_cast %22 : vector<1x32x8xbf16> to vector<32x8xbf16>
    %cst_25 = arith.constant dense<0.000000e+00> : vector<16x8xf32>
    %24 = tpu.matmul %5, %23, %cst_25 {dimension_numbers = #tpu.dot_dimension_numbers<[1], [0], [0], [1], [0, 0, 1, 1], [], []>} : vector<16x32xbf16>, vector<32x8xbf16>, vector<16x8xf32> -> vector<16x8xf32>
    %c0_26 = arith.constant 0 : index
    %c0_27 = arith.constant 0 : index
    %c0_28 = arith.constant 0 : index
    %25 = vector.load %arg10[%c0_26, %c0_27, %c0_28] : memref<4x1x8xf32, #tpu.memory_space<vmem>>, vector<1x1x8xf32>
    %26 = vector.shape_cast %25 : vector<1x1x8xf32> to vector<1x8xf32>
    %27 = vector.broadcast %26 : vector<1x8xf32> to vector<16x8xf32>
    %28 = arith.addf %24, %27 : vector<16x8xf32>
    %cst_29 = arith.constant 0.353553385 : f32
    %29 = vector.broadcast %cst_29 : f32 to vector<8x8xf32>
    %30 = arith.mulf %14, %29 : vector<8x8xf32>
    %31 = arith.truncf %30 : vector<8x8xf32> to vector<8x8xbf16>
    %32 = arith.truncf %21 : vector<16x8xf32> to vector<16x8xbf16>
    %cst_30 = arith.constant dense<0.000000e+00> : vector<8x16xf32>
    %33 = tpu.matmul %31, %32, %cst_30 {dimension_numbers = #tpu.dot_dimension_numbers<[1], [1], [0], [0], [0, 0, 1, 0], [], []>} : vector<8x8xbf16>, vector<16x8xbf16>, vector<8x16xf32> -> vector<8x16xf32>
    %34 = arith.addf %33, %7 : vector<8x16xf32>
    %cst_31 = arith.constant dense<0xFF800000> : vector<8xf32>
    %35 = vector.multi_reduction <maximumf>, %34, %cst_31 [1] : vector<8x16xf32> to vector<8xf32>
    %36 = vector.shape_cast %35 : vector<8xf32> to vector<8x1xf32>
    %37 = vector.broadcast %36 : vector<8x1xf32> to vector<8x16xf32>
    %38 = arith.subf %34, %37 : vector<8x16xf32>
    %39 = math.exp %38 : vector<8x16xf32>
    %cst_32 = arith.constant dense<0.000000e+00> : vector<8xf32>
    %40 = vector.multi_reduction <add>, %39, %cst_32 [1] : vector<8x16xf32> to vector<8xf32>
    %41 = vector.shape_cast %40 : vector<8xf32> to vector<8x1xf32>
    %42 = tpu.reciprocal %41 {approx = true} : vector<8x1xf32> -> vector<8x1xf32>
    %43 = vector.broadcast %42 : vector<8x1xf32> to vector<8x16xf32>
    %44 = arith.mulf %39, %43 : vector<8x16xf32>
    %45 = arith.truncf %44 : vector<8x16xf32> to vector<8x16xbf16>
    %46 = arith.truncf %28 : vector<16x8xf32> to vector<16x8xbf16>
    %cst_33 = arith.constant dense<0.000000e+00> : vector<8x8xf32>
    %47 = tpu.matmul %45, %46, %cst_33 {dimension_numbers = #tpu.dot_dimension_numbers<[1], [0], [0], [1], [0, 0, 1, 1], [], []>} : vector<8x16xbf16>, vector<16x8xbf16>, vector<8x8xf32> -> vector<8x8xf32>
    %c1 = arith.constant 1 : index
    %c0_34 = arith.constant 0 : index
    %c0_35 = arith.constant 0 : index
    %48 = vector.load %arg5[%c1, %c0_34, %c0_35] : memref<4x32x8xbf16, #tpu.memory_space<vmem>>, vector<1x32x8xbf16>
    %49 = vector.shape_cast %48 : vector<1x32x8xbf16> to vector<32x8xbf16>
    %cst_36 = arith.constant dense<0.000000e+00> : vector<8x8xf32>
    %50 = tpu.matmul %2, %49, %cst_36 {dimension_numbers = #tpu.dot_dimension_numbers<[1], [0], [0], [1], [0, 0, 1, 1], [], []>} : vector<8x32xbf16>, vector<32x8xbf16>, vector<8x8xf32> -> vector<8x8xf32>
    %c1_37 = arith.constant 1 : index
    %c0_38 = arith.constant 0 : index
    %c0_39 = arith.constant 0 : index
    %51 = vector.load %arg6[%c1_37, %c0_38, %c0_39] : memref<4x1x8xf32, #tpu.memory_space<vmem>>, vector<1x1x8xf32>
    %52 = vector.shape_cast %51 : vector<1x1x8xf32> to vector<1x8xf32>
    %53 = vector.broadcast %52 : vector<1x8xf32> to vector<8x8xf32>
    %54 = arith.addf %50, %53 : vector<8x8xf32>
    %c1_40 = arith.constant 1 : index
    %c0_41 = arith.constant 0 : index
    %c0_42 = arith.constant 0 : index
    %55 = vector.load %arg7[%c1_40, %c0_41, %c0_42] : memref<4x32x8xbf16, #tpu.memory_space<vmem>>, vector<1x32x8xbf16>
    %56 = vector.shape_cast %55 : vector<1x32x8xbf16> to vector<32x8xbf16>
    %cst_43 = arith.constant dense<0.000000e+00> : vector<16x8xf32>
    %57 = tpu.matmul %5, %56, %cst_43 {dimension_numbers = #tpu.dot_dimension_numbers<[1], [0], [0], [1], [0, 0, 1, 1], [], []>} : vector<16x32xbf16>, vector<32x8xbf16>, vector<16x8xf32> -> vector<16x8xf32>
    %c1_44 = arith.constant 1 : index
    %c0_45 = arith.constant 0 : index
    %c0_46 = arith.constant 0 : index
    %58 = vector.load %arg8[%c1_44, %c0_45, %c0_46] : memref<4x1x8xf32, #tpu.memory_space<vmem>>, vector<1x1x8xf32>
    %59 = vector.shape_cast %58 : vector<1x1x8xf32> to vector<1x8xf32>
    %60 = vector.broadcast %59 : vector<1x8xf32> to vector<16x8xf32>
    %61 = arith.addf %57, %60 : vector<16x8xf32>
    %c1_47 = arith.constant 1 : index
    %c0_48 = arith.constant 0 : index
    %c0_49 = arith.constant 0 : index
    %62 = vector.load %arg9[%c1_47, %c0_48, %c0_49] : memref<4x32x8xbf16, #tpu.memory_space<vmem>>, vector<1x32x8xbf16>
    %63 = vector.shape_cast %62 : vector<1x32x8xbf16> to vector<32x8xbf16>
    %cst_50 = arith.constant dense<0.000000e+00> : vector<16x8xf32>
    %64 = tpu.matmul %5, %63, %cst_50 {dimension_numbers = #tpu.dot_dimension_numbers<[1], [0], [0], [1], [0, 0, 1, 1], [], []>} : vector<16x32xbf16>, vector<32x8xbf16>, vector<16x8xf32> -> vector<16x8xf32>
    %c1_51 = arith.constant 1 : index
    %c0_52 = arith.constant 0 : index
    %c0_53 = arith.constant 0 : index
    %65 = vector.load %arg10[%c1_51, %c0_52, %c0_53] : memref<4x1x8xf32, #tpu.memory_space<vmem>>, vector<1x1x8xf32>
    %66 = vector.shape_cast %65 : vector<1x1x8xf32> to vector<1x8xf32>
    %67 = vector.broadcast %66 : vector<1x8xf32> to vector<16x8xf32>
    %68 = arith.addf %64, %67 : vector<16x8xf32>
    %cst_54 = arith.constant 0.353553385 : f32
    %69 = vector.broadcast %cst_54 : f32 to vector<8x8xf32>
    %70 = arith.mulf %54, %69 : vector<8x8xf32>
    %71 = arith.truncf %70 : vector<8x8xf32> to vector<8x8xbf16>
    %72 = arith.truncf %61 : vector<16x8xf32> to vector<16x8xbf16>
    %cst_55 = arith.constant dense<0.000000e+00> : vector<8x16xf32>
    %73 = tpu.matmul %71, %72, %cst_55 {dimension_numbers = #tpu.dot_dimension_numbers<[1], [1], [0], [0], [0, 0, 1, 0], [], []>} : vector<8x8xbf16>, vector<16x8xbf16>, vector<8x16xf32> -> vector<8x16xf32>
    %74 = arith.addf %73, %7 : vector<8x16xf32>
    %cst_56 = arith.constant dense<0xFF800000> : vector<8xf32>
    %75 = vector.multi_reduction <maximumf>, %74, %cst_56 [1] : vector<8x16xf32> to vector<8xf32>
    %76 = vector.shape_cast %75 : vector<8xf32> to vector<8x1xf32>
    %77 = vector.broadcast %76 : vector<8x1xf32> to vector<8x16xf32>
    %78 = arith.subf %74, %77 : vector<8x16xf32>
    %79 = math.exp %78 : vector<8x16xf32>
    %cst_57 = arith.constant dense<0.000000e+00> : vector<8xf32>
    %80 = vector.multi_reduction <add>, %79, %cst_57 [1] : vector<8x16xf32> to vector<8xf32>
    %81 = vector.shape_cast %80 : vector<8xf32> to vector<8x1xf32>
    %82 = tpu.reciprocal %81 {approx = true} : vector<8x1xf32> -> vector<8x1xf32>
    %83 = vector.broadcast %82 : vector<8x1xf32> to vector<8x16xf32>
    %84 = arith.mulf %79, %83 : vector<8x16xf32>
    %85 = arith.truncf %84 : vector<8x16xf32> to vector<8x16xbf16>
    %86 = arith.truncf %68 : vector<16x8xf32> to vector<16x8xbf16>
    %cst_58 = arith.constant dense<0.000000e+00> : vector<8x8xf32>
    %87 = tpu.matmul %85, %86, %cst_58 {dimension_numbers = #tpu.dot_dimension_numbers<[1], [0], [0], [1], [0, 0, 1, 1], [], []>} : vector<8x16xbf16>, vector<16x8xbf16>, vector<8x8xf32> -> vector<8x8xf32>
    %c2 = arith.constant 2 : index
    %c0_59 = arith.constant 0 : index
    %c0_60 = arith.constant 0 : index
    %88 = vector.load %arg5[%c2, %c0_59, %c0_60] : memref<4x32x8xbf16, #tpu.memory_space<vmem>>, vector<1x32x8xbf16>
    %89 = vector.shape_cast %88 : vector<1x32x8xbf16> to vector<32x8xbf16>
    %cst_61 = arith.constant dense<0.000000e+00> : vector<8x8xf32>
    %90 = tpu.matmul %2, %89, %cst_61 {dimension_numbers = #tpu.dot_dimension_numbers<[1], [0], [0], [1], [0, 0, 1, 1], [], []>} : vector<8x32xbf16>, vector<32x8xbf16>, vector<8x8xf32> -> vector<8x8xf32>
    %c2_62 = arith.constant 2 : index
    %c0_63 = arith.constant 0 : index
    %c0_64 = arith.constant 0 : index
    %91 = vector.load %arg6[%c2_62, %c0_63, %c0_64] : memref<4x1x8xf32, #tpu.memory_space<vmem>>, vector<1x1x8xf32>
    %92 = vector.shape_cast %91 : vector<1x1x8xf32> to vector<1x8xf32>
    %93 = vector.broadcast %92 : vector<1x8xf32> to vector<8x8xf32>
    %94 = arith.addf %90, %93 : vector<8x8xf32>
    %c2_65 = arith.constant 2 : index
    %c0_66 = arith.constant 0 : index
    %c0_67 = arith.constant 0 : index
    %95 = vector.load %arg7[%c2_65, %c0_66, %c0_67] : memref<4x32x8xbf16, #tpu.memory_space<vmem>>, vector<1x32x8xbf16>
    %96 = vector.shape_cast %95 : vector<1x32x8xbf16> to vector<32x8xbf16>
    %cst_68 = arith.constant dense<0.000000e+00> : vector<16x8xf32>
    %97 = tpu.matmul %5, %96, %cst_68 {dimension_numbers = #tpu.dot_dimension_numbers<[1], [0], [0], [1], [0, 0, 1, 1], [], []>} : vector<16x32xbf16>, vector<32x8xbf16>, vector<16x8xf32> -> vector<16x8xf32>
    %c2_69 = arith.constant 2 : index
    %c0_70 = arith.constant 0 : index
    %c0_71 = arith.constant 0 : index
    %98 = vector.load %arg8[%c2_69, %c0_70, %c0_71] : memref<4x1x8xf32, #tpu.memory_space<vmem>>, vector<1x1x8xf32>
    %99 = vector.shape_cast %98 : vector<1x1x8xf32> to vector<1x8xf32>
    %100 = vector.broadcast %99 : vector<1x8xf32> to vector<16x8xf32>
    %101 = arith.addf %97, %100 : vector<16x8xf32>
    %c2_72 = arith.constant 2 : index
    %c0_73 = arith.constant 0 : index
    %c0_74 = arith.constant 0 : index
    %102 = vector.load %arg9[%c2_72, %c0_73, %c0_74] : memref<4x32x8xbf16, #tpu.memory_space<vmem>>, vector<1x32x8xbf16>
    %103 = vector.shape_cast %102 : vector<1x32x8xbf16> to vector<32x8xbf16>
    %cst_75 = arith.constant dense<0.000000e+00> : vector<16x8xf32>
    %104 = tpu.matmul %5, %103, %cst_75 {dimension_numbers = #tpu.dot_dimension_numbers<[1], [0], [0], [1], [0, 0, 1, 1], [], []>} : vector<16x32xbf16>, vector<32x8xbf16>, vector<16x8xf32> -> vector<16x8xf32>
    %c2_76 = arith.constant 2 : index
    %c0_77 = arith.constant 0 : index
    %c0_78 = arith.constant 0 : index
    %105 = vector.load %arg10[%c2_76, %c0_77, %c0_78] : memref<4x1x8xf32, #tpu.memory_space<vmem>>, vector<1x1x8xf32>
    %106 = vector.shape_cast %105 : vector<1x1x8xf32> to vector<1x8xf32>
    %107 = vector.broadcast %106 : vector<1x8xf32> to vector<16x8xf32>
    %108 = arith.addf %104, %107 : vector<16x8xf32>
    %cst_79 = arith.constant 0.353553385 : f32
    %109 = vector.broadcast %cst_79 : f32 to vector<8x8xf32>
    %110 = arith.mulf %94, %109 : vector<8x8xf32>
    %111 = arith.truncf %110 : vector<8x8xf32> to vector<8x8xbf16>
    %112 = arith.truncf %101 : vector<16x8xf32> to vector<16x8xbf16>
    %cst_80 = arith.constant dense<0.000000e+00> : vector<8x16xf32>
    %113 = tpu.matmul %111, %112, %cst_80 {dimension_numbers = #tpu.dot_dimension_numbers<[1], [1], [0], [0], [0, 0, 1, 0], [], []>} : vector<8x8xbf16>, vector<16x8xbf16>, vector<8x16xf32> -> vector<8x16xf32>
    %114 = arith.addf %113, %7 : vector<8x16xf32>
    %cst_81 = arith.constant dense<0xFF800000> : vector<8xf32>
    %115 = vector.multi_reduction <maximumf>, %114, %cst_81 [1] : vector<8x16xf32> to vector<8xf32>
    %116 = vector.shape_cast %115 : vector<8xf32> to vector<8x1xf32>
    %117 = vector.broadcast %116 : vector<8x1xf32> to vector<8x16xf32>
    %118 = arith.subf %114, %117 : vector<8x16xf32>
    %119 = math.exp %118 : vector<8x16xf32>
    %cst_82 = arith.constant dense<0.000000e+00> : vector<8xf32>
    %120 = vector.multi_reduction <add>, %119, %cst_82 [1] : vector<8x16xf32> to vector<8xf32>
    %121 = vector.shape_cast %120 : vector<8xf32> to vector<8x1xf32>
    %122 = tpu.reciprocal %121 {approx = true} : vector<8x1xf32> -> vector<8x1xf32>
    %123 = vector.broadcast %122 : vector<8x1xf32> to vector<8x16xf32>
    %124 = arith.mulf %119, %123 : vector<8x16xf32>
    %125 = arith.truncf %124 : vector<8x16xf32> to vector<8x16xbf16>
    %126 = arith.truncf %108 : vector<16x8xf32> to vector<16x8xbf16>
    %cst_83 = arith.constant dense<0.000000e+00> : vector<8x8xf32>
    %127 = tpu.matmul %125, %126, %cst_83 {dimension_numbers = #tpu.dot_dimension_numbers<[1], [0], [0], [1], [0, 0, 1, 1], [], []>} : vector<8x16xbf16>, vector<16x8xbf16>, vector<8x8xf32> -> vector<8x8xf32>
    %c3 = arith.constant 3 : index
    %c0_84 = arith.constant 0 : index
    %c0_85 = arith.constant 0 : index
    %128 = vector.load %arg5[%c3, %c0_84, %c0_85] : memref<4x32x8xbf16, #tpu.memory_space<vmem>>, vector<1x32x8xbf16>
    %129 = vector.shape_cast %128 : vector<1x32x8xbf16> to vector<32x8xbf16>
    %cst_86 = arith.constant dense<0.000000e+00> : vector<8x8xf32>
    %130 = tpu.matmul %2, %129, %cst_86 {dimension_numbers = #tpu.dot_dimension_numbers<[1], [0], [0], [1], [0, 0, 1, 1], [], []>} : vector<8x32xbf16>, vector<32x8xbf16>, vector<8x8xf32> -> vector<8x8xf32>
    %c3_87 = arith.constant 3 : index
    %c0_88 = arith.constant 0 : index
    %c0_89 = arith.constant 0 : index
    %131 = vector.load %arg6[%c3_87, %c0_88, %c0_89] : memref<4x1x8xf32, #tpu.memory_space<vmem>>, vector<1x1x8xf32>
    %132 = vector.shape_cast %131 : vector<1x1x8xf32> to vector<1x8xf32>
    %133 = vector.broadcast %132 : vector<1x8xf32> to vector<8x8xf32>
    %134 = arith.addf %130, %133 : vector<8x8xf32>
    %c3_90 = arith.constant 3 : index
    %c0_91 = arith.constant 0 : index
    %c0_92 = arith.constant 0 : index
    %135 = vector.load %arg7[%c3_90, %c0_91, %c0_92] : memref<4x32x8xbf16, #tpu.memory_space<vmem>>, vector<1x32x8xbf16>
    %136 = vector.shape_cast %135 : vector<1x32x8xbf16> to vector<32x8xbf16>
    %cst_93 = arith.constant dense<0.000000e+00> : vector<16x8xf32>
    %137 = tpu.matmul %5, %136, %cst_93 {dimension_numbers = #tpu.dot_dimension_numbers<[1], [0], [0], [1], [0, 0, 1, 1], [], []>} : vector<16x32xbf16>, vector<32x8xbf16>, vector<16x8xf32> -> vector<16x8xf32>
    %c3_94 = arith.constant 3 : index
    %c0_95 = arith.constant 0 : index
    %c0_96 = arith.constant 0 : index
    %138 = vector.load %arg8[%c3_94, %c0_95, %c0_96] : memref<4x1x8xf32, #tpu.memory_space<vmem>>, vector<1x1x8xf32>
    %139 = vector.shape_cast %138 : vector<1x1x8xf32> to vector<1x8xf32>
    %140 = vector.broadcast %139 : vector<1x8xf32> to vector<16x8xf32>
    %141 = arith.addf %137, %140 : vector<16x8xf32>
    %c3_97 = arith.constant 3 : index
    %c0_98 = arith.constant 0 : index
    %c0_99 = arith.constant 0 : index
    %142 = vector.load %arg9[%c3_97, %c0_98, %c0_99] : memref<4x32x8xbf16, #tpu.memory_space<vmem>>, vector<1x32x8xbf16>
    %143 = vector.shape_cast %142 : vector<1x32x8xbf16> to vector<32x8xbf16>
    %cst_100 = arith.constant dense<0.000000e+00> : vector<16x8xf32>
    %144 = tpu.matmul %5, %143, %cst_100 {dimension_numbers = #tpu.dot_dimension_numbers<[1], [0], [0], [1], [0, 0, 1, 1], [], []>} : vector<16x32xbf16>, vector<32x8xbf16>, vector<16x8xf32> -> vector<16x8xf32>
    %c3_101 = arith.constant 3 : index
    %c0_102 = arith.constant 0 : index
    %c0_103 = arith.constant 0 : index
    %145 = vector.load %arg10[%c3_101, %c0_102, %c0_103] : memref<4x1x8xf32, #tpu.memory_space<vmem>>, vector<1x1x8xf32>
    %146 = vector.shape_cast %145 : vector<1x1x8xf32> to vector<1x8xf32>
    %147 = vector.broadcast %146 : vector<1x8xf32> to vector<16x8xf32>
    %148 = arith.addf %144, %147 : vector<16x8xf32>
    %cst_104 = arith.constant 0.353553385 : f32
    %149 = vector.broadcast %cst_104 : f32 to vector<8x8xf32>
    %150 = arith.mulf %134, %149 : vector<8x8xf32>
    %151 = arith.truncf %150 : vector<8x8xf32> to vector<8x8xbf16>
    %152 = arith.truncf %141 : vector<16x8xf32> to vector<16x8xbf16>
    %cst_105 = arith.constant dense<0.000000e+00> : vector<8x16xf32>
    %153 = tpu.matmul %151, %152, %cst_105 {dimension_numbers = #tpu.dot_dimension_numbers<[1], [1], [0], [0], [0, 0, 1, 0], [], []>} : vector<8x8xbf16>, vector<16x8xbf16>, vector<8x16xf32> -> vector<8x16xf32>
    %154 = arith.addf %153, %7 : vector<8x16xf32>
    %cst_106 = arith.constant dense<0xFF800000> : vector<8xf32>
    %155 = vector.multi_reduction <maximumf>, %154, %cst_106 [1] : vector<8x16xf32> to vector<8xf32>
    %156 = vector.shape_cast %155 : vector<8xf32> to vector<8x1xf32>
    %157 = vector.broadcast %156 : vector<8x1xf32> to vector<8x16xf32>
    %158 = arith.subf %154, %157 : vector<8x16xf32>
    %159 = math.exp %158 : vector<8x16xf32>
    %cst_107 = arith.constant dense<0.000000e+00> : vector<8xf32>
    %160 = vector.multi_reduction <add>, %159, %cst_107 [1] : vector<8x16xf32> to vector<8xf32>
    %161 = vector.shape_cast %160 : vector<8xf32> to vector<8x1xf32>
    %162 = tpu.reciprocal %161 {approx = true} : vector<8x1xf32> -> vector<8x1xf32>
    %163 = vector.broadcast %162 : vector<8x1xf32> to vector<8x16xf32>
    %164 = arith.mulf %159, %163 : vector<8x16xf32>
    %165 = arith.truncf %164 : vector<8x16xf32> to vector<8x16xbf16>
    %166 = arith.truncf %148 : vector<16x8xf32> to vector<16x8xbf16>
    %cst_108 = arith.constant dense<0.000000e+00> : vector<8x8xf32>
    %167 = tpu.matmul %165, %166, %cst_108 {dimension_numbers = #tpu.dot_dimension_numbers<[1], [0], [0], [1], [0, 0, 1, 1], [], []>} : vector<8x16xbf16>, vector<16x8xbf16>, vector<8x8xf32> -> vector<8x8xf32>
    %168 = tpu.concatenate %47, %87, %127, %167 in 1 : vector<8x8xf32>, vector<8x8xf32>, vector<8x8xf32>, vector<8x8xf32> -> vector<8x32xf32>
    %169 = arith.truncf %168 : vector<8x32xf32> to vector<8x32xbf16>
    %c0_109 = arith.constant 0 : index
    %c0_110 = arith.constant 0 : index
    %170 = vector.load %arg11[%c0_109, %c0_110] : memref<32x32xbf16, #tpu.memory_space<vmem>>, vector<32x32xbf16>
    %cst_111 = arith.constant dense<0.000000e+00> : vector<8x32xf32>
    %171 = tpu.matmul %169, %170, %cst_111 {dimension_numbers = #tpu.dot_dimension_numbers<[1], [0], [0], [1], [0, 0, 1, 1], [], []>} : vector<8x32xbf16>, vector<32x32xbf16>, vector<8x32xf32> -> vector<8x32xf32>
    %c0_112 = arith.constant 0 : index
    %c0_113 = arith.constant 0 : index
    %172 = vector.load %arg12[%c0_112, %c0_113] : memref<1x32xf32, #tpu.memory_space<vmem>>, vector<1x32xf32>
    %173 = vector.broadcast %172 : vector<1x32xf32> to vector<8x32xf32>
    %174 = arith.addf %171, %173 : vector<8x32xf32>
    %175 = arith.addf %1, %174 : vector<8x32xf32>
    %c0_114 = arith.constant 0 : index
    %c0_115 = arith.constant 0 : index
    %176 = vector.load %arg17[%c0_114, %c0_115] : memref<1x32xf32, #tpu.memory_space<vmem>>, vector<1x32xf32>
    %c0_116 = arith.constant 0 : index
    %c0_117 = arith.constant 0 : index
    %177 = vector.load %arg18[%c0_116, %c0_117] : memref<1x32xf32, #tpu.memory_space<vmem>>, vector<1x32xf32>
    %cst_118 = arith.constant dense<0.000000e+00> : vector<8xf32>
    %178 = vector.multi_reduction <add>, %175, %cst_118 [1] : vector<8x32xf32> to vector<8xf32>
    %179 = vector.shape_cast %178 : vector<8xf32> to vector<8x1xf32>
    %cst_119 = arith.constant 3.200000e+01 : f32
    %180 = vector.broadcast %cst_119 : f32 to vector<8x1xf32>
    %181 = arith.divf %179, %180 : vector<8x1xf32>
    %182 = vector.broadcast %181 : vector<8x1xf32> to vector<8x32xf32>
    %183 = arith.subf %175, %182 : vector<8x32xf32>
    %184 = arith.mulf %183, %183 : vector<8x32xf32>
    %cst_120 = arith.constant dense<0.000000e+00> : vector<8xf32>
    %185 = vector.multi_reduction <add>, %184, %cst_120 [1] : vector<8x32xf32> to vector<8xf32>
    %186 = vector.shape_cast %185 : vector<8xf32> to vector<8x1xf32>
    %cst_121 = arith.constant 3.200000e+01 : f32
    %187 = vector.broadcast %cst_121 : f32 to vector<8x1xf32>
    %188 = arith.divf %186, %187 : vector<8x1xf32>
    %189 = vector.broadcast %181 : vector<8x1xf32> to vector<8x32xf32>
    %190 = arith.subf %175, %189 : vector<8x32xf32>
    %cst_122 = arith.constant 9.99999974E-6 : f32
    %191 = vector.broadcast %cst_122 : f32 to vector<8x1xf32>
    %192 = arith.addf %188, %191 : vector<8x1xf32>
    %193 = math.rsqrt %192 : vector<8x1xf32>
    %194 = vector.broadcast %193 : vector<8x1xf32> to vector<8x32xf32>
    %195 = arith.mulf %190, %194 : vector<8x32xf32>
    %196 = vector.broadcast %176 : vector<1x32xf32> to vector<8x32xf32>
    %197 = arith.mulf %195, %196 : vector<8x32xf32>
    %198 = vector.broadcast %177 : vector<1x32xf32> to vector<8x32xf32>
    %199 = arith.addf %197, %198 : vector<8x32xf32>
    %200 = arith.truncf %199 : vector<8x32xf32> to vector<8x32xbf16>
    %c0_123 = arith.constant 0 : index
    %c0_124 = arith.constant 0 : index
    %201 = vector.load %arg13[%c0_123, %c0_124] : memref<32x64xbf16, #tpu.memory_space<vmem>>, vector<32x64xbf16>
    %cst_125 = arith.constant dense<0.000000e+00> : vector<8x64xf32>
    %202 = tpu.matmul %200, %201, %cst_125 {dimension_numbers = #tpu.dot_dimension_numbers<[1], [0], [0], [1], [0, 0, 1, 1], [], []>} : vector<8x32xbf16>, vector<32x64xbf16>, vector<8x64xf32> -> vector<8x64xf32>
    %c0_126 = arith.constant 0 : index
    %c0_127 = arith.constant 0 : index
    %203 = vector.load %arg14[%c0_126, %c0_127] : memref<1x64xf32, #tpu.memory_space<vmem>>, vector<1x64xf32>
    %204 = vector.broadcast %203 : vector<1x64xf32> to vector<8x64xf32>
    %205 = arith.addf %202, %204 : vector<8x64xf32>
    %cst_128 = arith.constant 0.000000e+00 : f32
    %206 = vector.broadcast %cst_128 : f32 to vector<8x64xf32>
    %207 = arith.maximumf %205, %206 : vector<8x64xf32>
    %208 = arith.truncf %207 : vector<8x64xf32> to vector<8x64xbf16>
    %c0_129 = arith.constant 0 : index
    %c0_130 = arith.constant 0 : index
    %209 = vector.load %arg15[%c0_129, %c0_130] : memref<64x32xbf16, #tpu.memory_space<vmem>>, vector<64x32xbf16>
    %cst_131 = arith.constant dense<0.000000e+00> : vector<8x32xf32>
    %210 = tpu.matmul %208, %209, %cst_131 {dimension_numbers = #tpu.dot_dimension_numbers<[1], [0], [0], [1], [0, 0, 1, 1], [], []>} : vector<8x64xbf16>, vector<64x32xbf16>, vector<8x32xf32> -> vector<8x32xf32>
    %c0_132 = arith.constant 0 : index
    %c0_133 = arith.constant 0 : index
    %211 = vector.load %arg16[%c0_132, %c0_133] : memref<1x32xf32, #tpu.memory_space<vmem>>, vector<1x32xf32>
    %212 = vector.broadcast %211 : vector<1x32xf32> to vector<8x32xf32>
    %213 = arith.addf %210, %212 : vector<8x32xf32>
    %214 = arith.addf %199, %213 : vector<8x32xf32>
    %c0_134 = arith.constant 0 : index
    %c0_135 = arith.constant 0 : index
    %215 = vector.load %arg19[%c0_134, %c0_135] : memref<1x32xf32, #tpu.memory_space<vmem>>, vector<1x32xf32>
    %c0_136 = arith.constant 0 : index
    %c0_137 = arith.constant 0 : index
    %216 = vector.load %arg20[%c0_136, %c0_137] : memref<1x32xf32, #tpu.memory_space<vmem>>, vector<1x32xf32>
    %cst_138 = arith.constant dense<0.000000e+00> : vector<8xf32>
    %217 = vector.multi_reduction <add>, %214, %cst_138 [1] : vector<8x32xf32> to vector<8xf32>
    %218 = vector.shape_cast %217 : vector<8xf32> to vector<8x1xf32>
    %cst_139 = arith.constant 3.200000e+01 : f32
    %219 = vector.broadcast %cst_139 : f32 to vector<8x1xf32>
    %220 = arith.divf %218, %219 : vector<8x1xf32>
    %221 = vector.broadcast %220 : vector<8x1xf32> to vector<8x32xf32>
    %222 = arith.subf %214, %221 : vector<8x32xf32>
    %223 = arith.mulf %222, %222 : vector<8x32xf32>
    %cst_140 = arith.constant dense<0.000000e+00> : vector<8xf32>
    %224 = vector.multi_reduction <add>, %223, %cst_140 [1] : vector<8x32xf32> to vector<8xf32>
    %225 = vector.shape_cast %224 : vector<8xf32> to vector<8x1xf32>
    %cst_141 = arith.constant 3.200000e+01 : f32
    %226 = vector.broadcast %cst_141 : f32 to vector<8x1xf32>
    %227 = arith.divf %225, %226 : vector<8x1xf32>
    %228 = vector.broadcast %220 : vector<8x1xf32> to vector<8x32xf32>
    %229 = arith.subf %214, %228 : vector<8x32xf32>
    %cst_142 = arith.constant 9.99999974E-6 : f32
    %230 = vector.broadcast %cst_142 : f32 to vector<8x1xf32>
    %231 = arith.addf %227, %230 : vector<8x1xf32>
    %232 = math.rsqrt %231 : vector<8x1xf32>
    %233 = vector.broadcast %232 : vector<8x1xf32> to vector<8x32xf32>
    %234 = arith.mulf %229, %233 : vector<8x32xf32>
    %235 = vector.broadcast %215 : vector<1x32xf32> to vector<8x32xf32>
    %236 = arith.mulf %234, %235 : vector<8x32xf32>
    %237 = vector.broadcast %216 : vector<1x32xf32> to vector<8x32xf32>
    %238 = arith.addf %236, %237 : vector<8x32xf32>
    %c0_143 = arith.constant 0 : index
    %c0_144 = arith.constant 0 : index
    %c0_145 = arith.constant 0 : index
    %239 = vector.load %arg21[%c0_143, %c0_144, %c0_145] : memref<1x8x32xf32, #tpu.memory_space<vmem>>, vector<1x8x32xf32>
    %240 = vector.shape_cast %239 : vector<1x8x32xf32> to vector<8x32xf32>
    %241 = vector.shape_cast %238 : vector<8x32xf32> to vector<1x8x32xf32>
    tpu.vector_store %arg21[%c0_143, %c0_144, %c0_145], %241 {strides = array<i32>} : memref<1x8x32xf32, #tpu.memory_space<vmem>>, vector<1x8x32xf32>,
    return
  }
  func.func @transform_0(%arg0: i32, %arg1: i32) -> (i32, i32, i32) {
    %c0_i32 = arith.constant 0 : i32
    %c0_i32_0 = arith.constant 0 : i32
    return %arg0, %arg1, %c0_i32 : i32, i32, i32
  }
  func.func @transform_1(%arg0: i32, %arg1: i32) -> (i32, i32, i32) {
    %c0_i32 = arith.constant 0 : i32
    %c0_i32_0 = arith.constant 0 : i32
    %c0_i32_1 = arith.constant 0 : i32
    return %arg0, %c0_i32, %c0_i32_0 : i32, i32, i32
  }
  func.func @transform_2(%arg0: i32, %arg1: i32) -> (i32, i32, i32, i32) {
    %c0_i32 = arith.constant 0 : i32
    %c0_i32_0 = arith.constant 0 : i32
    %c0_i32_1 = arith.constant 0 : i32
    return %arg0, %c0_i32, %arg1, %c0_i32_0 : i32, i32, i32, i32
  }
  func.func @transform_3(%arg0: i32, %arg1: i32) -> (i32, i32, i32) {
    %c0_i32 = arith.constant 0 : i32
    %c0_i32_0 = arith.constant 0 : i32
    %c0_i32_1 = arith.constant 0 : i32
    %c0_i32_2 = arith.constant 0 : i32
    return %c0_i32, %c0_i32_0, %c0_i32_1 : i32, i32, i32
  }
  func.func @transform_4(%arg0: i32, %arg1: i32) -> (i32, i32, i32) {
    %c0_i32 = arith.constant 0 : i32
    %c0_i32_0 = arith.constant 0 : i32
    %c0_i32_1 = arith.constant 0 : i32
    %c0_i32_2 = arith.constant 0 : i32
    return %c0_i32, %c0_i32_0, %c0_i32_1 : i32, i32, i32
  }
  func.func @transform_5(%arg0: i32, %arg1: i32) -> (i32, i32, i32) {
    %c0_i32 = arith.constant 0 : i32
    %c0_i32_0 = arith.constant 0 : i32
    %c0_i32_1 = arith.constant 0 : i32
    %c0_i32_2 = arith.constant 0 : i32
    return %c0_i32, %c0_i32_0, %c0_i32_1 : i32, i32, i32
  }
  func.func @transform_6(%arg0: i32, %arg1: i32) -> (i32, i32, i32) {
    %c0_i32 = arith.constant 0 : i32
    %c0_i32_0 = arith.constant 0 : i32
    %c0_i32_1 = arith.constant 0 : i32
    %c0_i32_2 = arith.constant 0 : i32
    return %c0_i32, %c0_i32_0, %c0_i32_1 : i32, i32, i32
  }
  func.func @transform_7(%arg0: i32, %arg1: i32) -> (i32, i32, i32) {
    %c0_i32 = arith.constant 0 : i32
    %c0_i32_0 = arith.constant 0 : i32
    %c0_i32_1 = arith.constant 0 : i32
    %c0_i32_2 = arith.constant 0 : i32
    return %c0_i32, %c0_i32_0, %c0_i32_1 : i32, i32, i32
  }
  func.func @transform_8(%arg0: i32, %arg1: i32) -> (i32, i32, i32) {
    %c0_i32 = arith.constant 0 : i32
    %c0_i32_0 = arith.constant 0 : i32
    %c0_i32_1 = arith.constant 0 : i32
    %c0_i32_2 = arith.constant 0 : i32
    return %c0_i32, %c0_i32_0, %c0_i32_1 : i32, i32, i32
  }
  func.func @transform_9(%arg0: i32, %arg1: i32) -> (i32, i32) {
    %c0_i32 = arith.constant 0 : i32
    %c0_i32_0 = arith.constant 0 : i32
    %c0_i32_1 = arith.constant 0 : i32
    return %c0_i32, %c0_i32_0 : i32, i32
  }
  func.func @transform_10(%arg0: i32, %arg1: i32) -> (i32, i32) {
    %c0_i32 = arith.constant 0 : i32
    %c0_i32_0 = arith.constant 0 : i32
    %c0_i32_1 = arith.constant 0 : i32
    return %c0_i32, %c0_i32_0 : i32, i32
  }
  func.func @transform_11(%arg0: i32, %arg1: i32) -> (i32, i32) {
    %c0_i32 = arith.constant 0 : i32
    %c0_i32_0 = arith.constant 0 : i32
    %c0_i32_1 = arith.constant 0 : i32
    return %c0_i32, %c0_i32_0 : i32, i32
  }
  func.func @transform_12(%arg0: i32, %arg1: i32) -> (i32, i32) {
    %c0_i32 = arith.constant 0 : i32
    %c0_i32_0 = arith.constant 0 : i32
    %c0_i32_1 = arith.constant 0 : i32
    return %c0_i32, %c0_i32_0 : i32, i32
  }
  func.func @transform_13(%arg0: i32, %arg1: i32) -> (i32, i32) {
    %c0_i32 = arith.constant 0 : i32
    %c0_i32_0 = arith.constant 0 : i32
    %c0_i32_1 = arith.constant 0 : i32
    return %c0_i32, %c0_i32_0 : i32, i32
  }
  func.func @transform_14(%arg0: i32, %arg1: i32) -> (i32, i32) {
    %c0_i32 = arith.constant 0 : i32
    %c0_i32_0 = arith.constant 0 : i32
    %c0_i32_1 = arith.constant 0 : i32
    return %c0_i32, %c0_i32_0 : i32, i32
  }
  func.func @transform_15(%arg0: i32, %arg1: i32) -> (i32, i32) {
    %c0_i32 = arith.constant 0 : i32
    %c0_i32_0 = arith.constant 0 : i32
    %c0_i32_1 = arith.constant 0 : i32
    return %c0_i32, %c0_i32_0 : i32, i32
  }
  func.func @transform_16(%arg0: i32, %arg1: i32) -> (i32, i32) {
    %c0_i32 = arith.constant 0 : i32
    %c0_i32_0 = arith.constant 0 : i32
    %c0_i32_1 = arith.constant 0 : i32
    return %c0_i32, %c0_i32_0 : i32, i32
  }
  func.func @transform_17(%arg0: i32, %arg1: i32) -> (i32, i32) {
    %c0_i32 = arith.constant 0 : i32
    %c0_i32_0 = arith.constant 0 : i32
    %c0_i32_1 = arith.constant 0 : i32
    return %c0_i32, %c0_i32_0 : i32, i32
  }
  func.func @transform_18(%arg0: i32, %arg1: i32) -> (i32, i32) {
    %c0_i32 = arith.constant 0 : i32
    %c0_i32_0 = arith.constant 0 : i32
    %c0_i32_1 = arith.constant 0 : i32
    return %c0_i32, %c0_i32_0 : i32, i32
  }
  func.func @transform_19(%arg0: i32, %arg1: i32) -> (i32, i32, i32) {
    %c0_i32 = arith.constant 0 : i32
    %c0_i32_0 = arith.constant 0 : i32
    return %arg0, %arg1, %c0_i32 : i32, i32, i32
  }
}

</mosaic_0001>

<llo_original>
// kernel: tpu_custom_call.1
$region0: #{tpu_custom_call.1}
  #allocation0 [shape = 'u32[]', space=smem, size = 0x4, offset = 0x4, fixed_abs, tag = 'smem constant byte address 0x4 - core index']
  #allocation1 [shape = 'u32[144,128]{1,0:T(1,128)}', space=vmem, size = 0x12000, scoped, tag = 'internal scratch']
  %s0 = inlined_call_operand.vmem [shape: f32[2,16,32], index: 0, kind: input, shape index: {}]
  %s1 = inlined_call_operand.vmem [shape: f32[2,16,32], index: 1, kind: input, shape index: {}]
  %s2 = inlined_call_operand.vmem [shape: f32[2,1,16,16], index: 2, kind: input, shape index: {}]
  %s3 = inlined_call_operand.vmem [shape: bf16[4,32,8], index: 3, kind: input, shape index: {}]
  %s4 = inlined_call_operand.vmem [shape: f32[4,1,8], index: 4, kind: input, shape index: {}]
  %s5 = inlined_call_operand.vmem [shape: bf16[4,32,8], index: 5, kind: input, shape index: {}]
  %s6 = inlined_call_operand.vmem [shape: f32[4,1,8], index: 6, kind: input, shape index: {}]
  %s7 = inlined_call_operand.vmem [shape: bf16[4,32,8], index: 7, kind: input, shape index: {}]
  %s8 = inlined_call_operand.vmem [shape: f32[4,1,8], index: 8, kind: input, shape index: {}]
  %s9 = inlined_call_operand.vmem [shape: bf16[32,32], index: 9, kind: input, shape index: {}]
  %s10 = inlined_call_operand.vmem [shape: f32[1,32], index: 10, kind: input, shape index: {}]
  %s11 = inlined_call_operand.vmem [shape: bf16[32,64], index: 11, kind: input, shape index: {}]
  %s12 = inlined_call_operand.vmem [shape: f32[1,64], index: 12, kind: input, shape index: {}]
  %s13 = inlined_call_operand.vmem [shape: bf16[64,32], index: 13, kind: input, shape index: {}]
  %s14 = inlined_call_operand.vmem [shape: f32[1,32], index: 14, kind: input, shape index: {}]
  %s15 = inlined_call_operand.vmem [shape: f32[1,32], index: 15, kind: input, shape index: {}]
  %s16 = inlined_call_operand.vmem [shape: f32[1,32], index: 16, kind: input, shape index: {}]
  %s17 = inlined_call_operand.vmem [shape: f32[1,32], index: 17, kind: input, shape index: {}]
  %s18 = inlined_call_operand.vmem [shape: f32[1,32], index: 18, kind: input, shape index: {}]
  %s19 = inlined_call_operand.hbm [shape: f32[2,16,32], index: 19, kind: output, shape index: {}]
  %s20 = sld [smem:[#allocation0]]
  $region109: #{tpu_custom_call.1} parent=0
    _
  %s22 = ssub.s32 1, %s20
  %s23 = scalar_select 0, %s22, %s20
  $region1: #{tpu_custom_call.1} parent=0
    #allocation2 [shape = 'u8[8192]{0}', space=vmem, size = 0x2000, scoped, tag = 'output window, operand 0']
    #allocation3 [shape = 's32[2]{0}', space=sflag, size = 0x8, scoped, tag = 'scoped memory for tpu_custom_call.1']
    %24 = vsyncpa [#allocation3], 0
    %s25 = scalar_lea.sflag [#allocation3], 1
    %26 = vsyncpa %s25, 0
    loop: start=0, step=1, limit=6
    $region2: #{tpu_custom_call.1} parent=1 // loop_pre_header
      _
    $region3: #{tpu_custom_call.1} parent=1 // loop_header
      %s28 = sphi 0, %s32
      %p29 = scmp.ge.s32.totalorder %s28, 6
      %s35 = sphi 0, %s47
      %s36 = sphi 0, %s43
      %s37 = sphi 0, %s35
      %s38 = sphi 0, %s36
      %s39 = sphi 0, %s37
      %s40 = sphi 0, %s38
      %s52 = sphi 0, %s54
      %s55 = sphi 0, %s52
      %s56 = sphi 0, %s55
      %s72 = sphi 0, %s56
      %s78 = sphi 0, %s80
      %s81 = sphi 0, %s78
      %s82 = sphi 0, %s81
      %s98 = sphi 0, %s82
      %s106 = sphi 0, %s108
      %s109 = sphi 0, %s106
      %s110 = sphi 0, %s109
      %s126 = sphi 0, %s110
      %s130 = sphi 0, %s130
      %s132 = sphi 0, %s130
      %s133 = sphi 0, %s132
      %s147 = sphi 0, %s133
      %s151 = sphi 0, %s151
      %s153 = sphi 0, %s151
      %s154 = sphi 0, %s153
      %s168 = sphi 0, %s154
      %s172 = sphi 0, %s172
      %s174 = sphi 0, %s172
      %s175 = sphi 0, %s174
      %s189 = sphi 0, %s175
      %s193 = sphi 0, %s193
      %s195 = sphi 0, %s193
      %s196 = sphi 0, %s195
      %s210 = sphi 0, %s196
      %s214 = sphi 0, %s214
      %s216 = sphi 0, %s214
      %s217 = sphi 0, %s216
      %s231 = sphi 0, %s217
      %s235 = sphi 0, %s235
      %s237 = sphi 0, %s235
      %s238 = sphi 0, %s237
      %s252 = sphi 0, %s238
      %s256 = sphi 0, %s256
      %s258 = sphi 0, %s256
      %s259 = sphi 0, %s258
      %s273 = sphi 0, %s259
      %s277 = sphi 0, %s277
      %s279 = sphi 0, %s277
      %s280 = sphi 0, %s279
      %s294 = sphi 0, %s280
      %s298 = sphi 0, %s298
      %s300 = sphi 0, %s298
      %s301 = sphi 0, %s300
      %s315 = sphi 0, %s301
      %s319 = sphi 0, %s319
      %s321 = sphi 0, %s319
      %s322 = sphi 0, %s321
      %s336 = sphi 0, %s322
      %s340 = sphi 0, %s340
      %s342 = sphi 0, %s340
      %s343 = sphi 0, %s342
      %s357 = sphi 0, %s343
      %s361 = sphi 0, %s361
      %s363 = sphi 0, %s361
      %s364 = sphi 0, %s363
      %s378 = sphi 0, %s364
      %s382 = sphi 0, %s382
      %s384 = sphi 0, %s382
      %s385 = sphi 0, %s384
      %s399 = sphi 0, %s385
      %s403 = sphi 0, %s403
      %s405 = sphi 0, %s403
      %s406 = sphi 0, %s405
      %s420 = sphi 0, %s406
      %s424 = sphi 0, %s424
      %s426 = sphi 0, %s424
      %s427 = sphi 0, %s426
      %s441 = sphi 0, %s427
      %s445 = sphi 0, %s445
      %s447 = sphi 0, %s445
      %s448 = sphi 0, %s447
      %s462 = sphi 0, %s448
      %s470 = sphi 0, %s472
      %s473 = sphi 0, %s470
      %s474 = sphi 0, %s473
      %s490 = sphi 0, %s474
    $region4: #{tpu_custom_call.1} parent=1 // loop_header_branch
      %31 = sbr.rel (%p29) target = $region8
    $region5: #{tpu_custom_call.1} parent=1 // loop_body
      %s33 = ssub.s32 %s28, 1
      %s34 = ssub.s32 %s28, 2
      %s41 = sadd.s32 1, %s36
      %p42 = scmp.ge.s32.totalorder %s41, 2
      %s43 = scalar_select %p42, 0, %s41
      %s44 = sadd.s32 1, %s35
      %s45 = scalar_select %p42, %s44, %s35
      %p46 = scmp.ge.s32.totalorder %s45, 2
      %s47 = scalar_select %p46, 0, %s45
      %s48 = ssub.s32 %s35, %s47
      %s49 = ssub.s32 %s36, %s43
      %s50 = sor.u32 %s48, %s49
      %p51 = scmp.eq.s32.totalorder %s50, 0
      %s53 = sadd.s32 %s52, 1
      %s54 = scalar_select %p51, %s52, %s53
      %p57 = pneg %p51
      %p58 = scmp.eq.s32.totalorder %s28, 3
      %p59 = por %p57, %p58
      %p60 = scmp.ne.s32.totalorder %s52, %s55
      %p61 = scmp.eq.s32.totalorder %s28, 0
      %p62 = por %p60, %p61
      %p63 = scmp.ne.s32.totalorder %s52, %s55
      %p64 = scmp.eq.s32.totalorder %s33, 3
      %p65 = por %p63, %p64
      %p66 = scmp.ne.s32.totalorder %s55, %s56
      %p67 = scmp.eq.s32.totalorder %s33, 0
      %p68 = por %p66, %p67
      %p69 = scmp.ne.s32.totalorder %s55, %s56
      %p70 = scmp.eq.s32.totalorder %s34, 3
      %p71 = por %p69, %p70
      %p73 = scmp.ne.s32.totalorder %s56, %s72
      %p74 = scmp.eq.s32.totalorder %s34, 0
      %p75 = por %p73, %p74
      %s76 = ssub.s32 %s35, %s47
      %p77 = scmp.eq.s32.totalorder %s76, 0
      %s79 = sadd.s32 %s78, 1
      %s80 = scalar_select %p77, %s78, %s79
      %p83 = pneg %p77
      %p84 = scmp.eq.s32.totalorder %s28, 3
      %p85 = por %p83, %p84
      %p86 = scmp.ne.s32.totalorder %s78, %s81
      %p87 = scmp.eq.s32.totalorder %s28, 0
      %p88 = por %p86, %p87
      %p89 = scmp.ne.s32.totalorder %s78, %s81
      %p90 = scmp.eq.s32.totalorder %s33, 3
      %p91 = por %p89, %p90
      %p92 = scmp.ne.s32.totalorder %s81, %s82
      %p93 = scmp.eq.s32.totalorder %s33, 0
      %p94 = por %p92, %p93
      %p95 = scmp.ne.s32.totalorder %s81, %s82
      %p96 = scmp.eq.s32.totalorder %s34, 3
      %p97 = por %p95, %p96
      %p99 = scmp.ne.s32.totalorder %s82, %s98
      %p100 = scmp.eq.s32.totalorder %s34, 0
      %p101 = por %p99, %p100
      %s102 = ssub.s32 %s35, %s47
      %s103 = ssub.s32 %s36, %s43
      %s104 = sor.u32 %s102, %s103
      %p105 = scmp.eq.s32.totalorder %s104, 0
      %s107 = sadd.s32 %s106, 1
      %s108 = scalar_select %p105, %s106, %s107
      %p111 = pneg %p105
      %p112 = scmp.eq.s32.totalorder %s28, 3
      %p113 = por %p111, %p112
      %p114 = scmp.ne.s32.totalorder %s106, %s109
      %p115 = scmp.eq.s32.totalorder %s28, 0
      %p116 = por %p114, %p115
      %p117 = scmp.ne.s32.totalorder %s106, %s109
      %p118 = scmp.eq.s32.totalorder %s33, 3
      %p119 = por %p117, %p118
      %p120 = scmp.ne.s32.totalorder %s109, %s110
      %p121 = scmp.eq.s32.totalorder %s33, 0
      %p122 = por %p120, %p121
      %p123 = scmp.ne.s32.totalorder %s109, %s110
      %p124 = scmp.eq.s32.totalorder %s34, 3
      %p125 = por %p123, %p124
      %p127 = scmp.ne.s32.totalorder %s110, %s126
      %p128 = scmp.eq.s32.totalorder %s34, 0
      %p129 = por %p127, %p128
      %s131 = sadd.s32 %s130, 1
      %p134 = scmp.eq.s32.totalorder %s28, 3
      %p135 = scmp.ne.s32.totalorder %s130, %s132
      %p136 = scmp.eq.s32.totalorder %s28, 0
      %p137 = por %p135, %p136
      %p138 = scmp.ne.s32.totalorder %s130, %s132
      %p139 = scmp.eq.s32.totalorder %s33, 3
      %p140 = por %p138, %p139
      %p141 = scmp.ne.s32.totalorder %s132, %s133
      %p142 = scmp.eq.s32.totalorder %s33, 0
      %p143 = por %p141, %p142
      %p144 = scmp.ne.s32.totalorder %s132, %s133
      %p145 = scmp.eq.s32.totalorder %s34, 3
      %p146 = por %p144, %p145
      %p148 = scmp.ne.s32.totalorder %s133, %s147
      %p149 = scmp.eq.s32.totalorder %s34, 0
      %p150 = por %p148, %p149
      %s152 = sadd.s32 %s151, 1
      %p155 = scmp.eq.s32.totalorder %s28, 3
      %p156 = scmp.ne.s32.totalorder %s151, %s153
      %p157 = scmp.eq.s32.totalorder %s28, 0
      %p158 = por %p156, %p157
      %p159 = scmp.ne.s32.totalorder %s151, %s153
      %p160 = scmp.eq.s32.totalorder %s33, 3
      %p161 = por %p159, %p160
      %p162 = scmp.ne.s32.totalorder %s153, %s154
      %p163 = scmp.eq.s32.totalorder %s33, 0
      %p164 = por %p162, %p163
      %p165 = scmp.ne.s32.totalorder %s153, %s154
      %p166 = scmp.eq.s32.totalorder %s34, 3
      %p167 = por %p165, %p166
      %p169 = scmp.ne.s32.totalorder %s154, %s168
      %p170 = scmp.eq.s32.totalorder %s34, 0
      %p171 = por %p169, %p170
      %s173 = sadd.s32 %s172, 1
      %p176 = scmp.eq.s32.totalorder %s28, 3
      %p177 = scmp.ne.s32.totalorder %s172, %s174
      %p178 = scmp.eq.s32.totalorder %s28, 0
      %p179 = por %p177, %p178
      %p180 = scmp.ne.s32.totalorder %s172, %s174
      %p181 = scmp.eq.s32.totalorder %s33, 3
      %p182 = por %p180, %p181
      %p183 = scmp.ne.s32.totalorder %s174, %s175
      %p184 = scmp.eq.s32.totalorder %s33, 0
      %p185 = por %p183, %p184
      %p186 = scmp.ne.s32.totalorder %s174, %s175
      %p187 = scmp.eq.s32.totalorder %s34, 3
      %p188 = por %p186, %p187
      %p190 = scmp.ne.s32.totalorder %s175, %s189
      %p191 = scmp.eq.s32.totalorder %s34, 0
      %p192 = por %p190, %p191
      %s194 = sadd.s32 %s193, 1
      %p197 = scmp.eq.s32.totalorder %s28, 3
      %p198 = scmp.ne.s32.totalorder %s193, %s195
      %p199 = scmp.eq.s32.totalorder %s28, 0
      %p200 = por %p198, %p199
      %p201 = scmp.ne.s32.totalorder %s193, %s195
      %p202 = scmp.eq.s32.totalorder %s33, 3
      %p203 = por %p201, %p202
      %p204 = scmp.ne.s32.totalorder %s195, %s196
      %p205 = scmp.eq.s32.totalorder %s33, 0
      %p206 = por %p204, %p205
      %p207 = scmp.ne.s32.totalorder %s195, %s196
      %p208 = scmp.eq.s32.totalorder %s34, 3
      %p209 = por %p207, %p208
      %p211 = scmp.ne.s32.totalorder %s196, %s210
      %p212 = scmp.eq.s32.totalorder %s34, 0
      %p213 = por %p211, %p212
      %s215 = sadd.s32 %s214, 1
      %p218 = scmp.eq.s32.totalorder %s28, 3
      %p219 = scmp.ne.s32.totalorder %s214, %s216
      %p220 = scmp.eq.s32.totalorder %s28, 0
      %p221 = por %p219, %p220
      %p222 = scmp.ne.s32.totalorder %s214, %s216
      %p223 = scmp.eq.s32.totalorder %s33, 3
      %p224 = por %p222, %p223
      %p225 = scmp.ne.s32.totalorder %s216, %s217
      %p226 = scmp.eq.s32.totalorder %s33, 0
      %p227 = por %p225, %p226
      %p228 = scmp.ne.s32.totalorder %s216, %s217
      %p229 = scmp.eq.s32.totalorder %s34, 3
      %p230 = por %p228, %p229
      %p232 = scmp.ne.s32.totalorder %s217, %s231
      %p233 = scmp.eq.s32.totalorder %s34, 0
      %p234 = por %p232, %p233
      %s236 = sadd.s32 %s235, 1
      %p239 = scmp.eq.s32.totalorder %s28, 3
      %p240 = scmp.ne.s32.totalorder %s235, %s237
      %p241 = scmp.eq.s32.totalorder %s28, 0
      %p242 = por %p240, %p241
      %p243 = scmp.ne.s32.totalorder %s235, %s237
      %p244 = scmp.eq.s32.totalorder %s33, 3
      %p245 = por %p243, %p244
      %p246 = scmp.ne.s32.totalorder %s237, %s238
      %p247 = scmp.eq.s32.totalorder %s33, 0
      %p248 = por %p246, %p247
      %p249 = scmp.ne.s32.totalorder %s237, %s238
      %p250 = scmp.eq.s32.totalorder %s34, 3
      %p251 = por %p249, %p250
      %p253 = scmp.ne.s32.totalorder %s238, %s252
      %p254 = scmp.eq.s32.totalorder %s34, 0
      %p255 = por %p253, %p254
      %s257 = sadd.s32 %s256, 1
      %p260 = scmp.eq.s32.totalorder %s28, 3
      %p261 = scmp.ne.s32.totalorder %s256, %s258
      %p262 = scmp.eq.s32.totalorder %s28, 0
      %p263 = por %p261, %p262
      %p264 = scmp.ne.s32.totalorder %s256, %s258
      %p265 = scmp.eq.s32.totalorder %s33, 3
      %p266 = por %p264, %p265
      %p267 = scmp.ne.s32.totalorder %s258, %s259
      %p268 = scmp.eq.s32.totalorder %s33, 0
      %p269 = por %p267, %p268
      %p270 = scmp.ne.s32.totalorder %s258, %s259
      %p271 = scmp.eq.s32.totalorder %s34, 3
      %p272 = por %p270, %p271
      %p274 = scmp.ne.s32.totalorder %s259, %s273
      %p275 = scmp.eq.s32.totalorder %s34, 0
      %p276 = por %p274, %p275
      %s278 = sadd.s32 %s277, 1
      %p281 = scmp.eq.s32.totalorder %s28, 3
      %p282 = scmp.ne.s32.totalorder %s277, %s279
      %p283 = scmp.eq.s32.totalorder %s28, 0
      %p284 = por %p282, %p283
      %p285 = scmp.ne.s32.totalorder %s277, %s279
      %p286 = scmp.eq.s32.totalorder %s33, 3
      %p287 = por %p285, %p286
      %p288 = scmp.ne.s32.totalorder %s279, %s280
      %p289 = scmp.eq.s32.totalorder %s33, 0
      %p290 = por %p288, %p289
      %p291 = scmp.ne.s32.totalorder %s279, %s280
      %p292 = scmp.eq.s32.totalorder %s34, 3
      %p293 = por %p291, %p292
      %p295 = scmp.ne.s32.totalorder %s280, %s294
      %p296 = scmp.eq.s32.totalorder %s34, 0
      %p297 = por %p295, %p296
      %s299 = sadd.s32 %s298, 1
      %p302 = scmp.eq.s32.totalorder %s28, 3
      %p303 = scmp.ne.s32.totalorder %s298, %s300
      %p304 = scmp.eq.s32.totalorder %s28, 0
      %p305 = por %p303, %p304
      %p306 = scmp.ne.s32.totalorder %s298, %s300
      %p307 = scmp.eq.s32.totalorder %s33, 3
      %p308 = por %p306, %p307
      %p309 = scmp.ne.s32.totalorder %s300, %s301
      %p310 = scmp.eq.s32.totalorder %s33, 0
      %p311 = por %p309, %p310
      %p312 = scmp.ne.s32.totalorder %s300, %s301
      %p313 = scmp.eq.s32.totalorder %s34, 3
      %p314 = por %p312, %p313
      %p316 = scmp.ne.s32.totalorder %s301, %s315
      %p317 = scmp.eq.s32.totalorder %s34, 0
      %p318 = por %p316, %p317
      %s320 = sadd.s32 %s319, 1
      %p323 = scmp.eq.s32.totalorder %s28, 3
      %p324 = scmp.ne.s32.totalorder %s319, %s321
      %p325 = scmp.eq.s32.totalorder %s28, 0
      %p326 = por %p324, %p325
      %p327 = scmp.ne.s32.totalorder %s319, %s321
      %p328 = scmp.eq.s32.totalorder %s33, 3
      %p329 = por %p327, %p328
      %p330 = scmp.ne.s32.totalorder %s321, %s322
      %p331 = scmp.eq.s32.totalorder %s33, 0
      %p332 = por %p330, %p331
      %p333 = scmp.ne.s32.totalorder %s321, %s322
      %p334 = scmp.eq.s32.totalorder %s34, 3
      %p335 = por %p333, %p334
      %p337 = scmp.ne.s32.totalorder %s322, %s336
      %p338 = scmp.eq.s32.totalorder %s34, 0
      %p339 = por %p337, %p338
      %s341 = sadd.s32 %s340, 1
      %p344 = scmp.eq.s32.totalorder %s28, 3
      %p345 = scmp.ne.s32.totalorder %s340, %s342
      %p346 = scmp.eq.s32.totalorder %s28, 0
      %p347 = por %p345, %p346
      %p348 = scmp.ne.s32.totalorder %s340, %s342
      %p349 = scmp.eq.s32.totalorder %s33, 3
      %p350 = por %p348, %p349
      %p351 = scmp.ne.s32.totalorder %s342, %s343
      %p352 = scmp.eq.s32.totalorder %s33, 0
      %p353 = por %p351, %p352
      %p354 = scmp.ne.s32.totalorder %s342, %s343
      %p355 = scmp.eq.s32.totalorder %s34, 3
      %p356 = por %p354, %p355
      %p358 = scmp.ne.s32.totalorder %s343, %s357
      %p359 = scmp.eq.s32.totalorder %s34, 0
      %p360 = por %p358, %p359
      %s362 = sadd.s32 %s361, 1
      %p365 = scmp.eq.s32.totalorder %s28, 3
      %p366 = scmp.ne.s32.totalorder %s361, %s363
      %p367 = scmp.eq.s32.totalorder %s28, 0
      %p368 = por %p366, %p367
      %p369 = scmp.ne.s32.totalorder %s361, %s363
      %p370 = scmp.eq.s32.totalorder %s33, 3
      %p371 = por %p369, %p370
      %p372 = scmp.ne.s32.totalorder %s363, %s364
      %p373 = scmp.eq.s32.totalorder %s33, 0
      %p374 = por %p372, %p373
      %p375 = scmp.ne.s32.totalorder %s363, %s364
      %p376 = scmp.eq.s32.totalorder %s34, 3
      %p377 = por %p375, %p376
      %p379 = scmp.ne.s32.totalorder %s364, %s378
      %p380 = scmp.eq.s32.totalorder %s34, 0
      %p381 = por %p379, %p380
      %s383 = sadd.s32 %s382, 1
      %p386 = scmp.eq.s32.totalorder %s28, 3
      %p387 = scmp.ne.s32.totalorder %s382, %s384
      %p388 = scmp.eq.s32.totalorder %s28, 0
      %p389 = por %p387, %p388
      %p390 = scmp.ne.s32.totalorder %s382, %s384
      %p391 = scmp.eq.s32.totalorder %s33, 3
      %p392 = por %p390, %p391
      %p393 = scmp.ne.s32.totalorder %s384, %s385
      %p394 = scmp.eq.s32.totalorder %s33, 0
      %p395 = por %p393, %p394
      %p396 = scmp.ne.s32.totalorder %s384, %s385
      %p397 = scmp.eq.s32.totalorder %s34, 3
      %p398 = por %p396, %p397
      %p400 = scmp.ne.s32.totalorder %s385, %s399
      %p401 = scmp.eq.s32.totalorder %s34, 0
      %p402 = por %p400, %p401
      %s404 = sadd.s32 %s403, 1
      %p407 = scmp.eq.s32.totalorder %s28, 3
      %p408 = scmp.ne.s32.totalorder %s403, %s405
      %p409 = scmp.eq.s32.totalorder %s28, 0
      %p410 = por %p408, %p409
      %p411 = scmp.ne.s32.totalorder %s403, %s405
      %p412 = scmp.eq.s32.totalorder %s33, 3
      %p413 = por %p411, %p412
      %p414 = scmp.ne.s32.totalorder %s405, %s406
      %p415 = scmp.eq.s32.totalorder %s33, 0
      %p416 = por %p414, %p415
      %p417 = scmp.ne.s32.totalorder %s405, %s406
      %p418 = scmp.eq.s32.totalorder %s34, 3
      %p419 = por %p417, %p418
      %p421 = scmp.ne.s32.totalorder %s406, %s420
      %p422 = scmp.eq.s32.totalorder %s34, 0
      %p423 = por %p421, %p422
      %s425 = sadd.s32 %s424, 1
      %p428 = scmp.eq.s32.totalorder %s28, 3
      %p429 = scmp.ne.s32.totalorder %s424, %s426
      %p430 = scmp.eq.s32.totalorder %s28, 0
      %p431 = por %p429, %p430
      %p432 = scmp.ne.s32.totalorder %s424, %s426
      %p433 = scmp.eq.s32.totalorder %s33, 3
      %p434 = por %p432, %p433
      %p435 = scmp.ne.s32.totalorder %s426, %s427
      %p436 = scmp.eq.s32.totalorder %s33, 0
      %p437 = por %p435, %p436
      %p438 = scmp.ne.s32.totalorder %s426, %s427
      %p439 = scmp.eq.s32.totalorder %s34, 3
      %p440 = por %p438, %p439
      %p442 = scmp.ne.s32.totalorder %s427, %s441
      %p443 = scmp.eq.s32.totalorder %s34, 0
      %p444 = por %p442, %p443
      %s446 = sadd.s32 %s445, 1
      %p449 = scmp.eq.s32.totalorder %s28, 3
      %p450 = scmp.ne.s32.totalorder %s445, %s447
      %p451 = scmp.eq.s32.totalorder %s28, 0
      %p452 = por %p450, %p451
      %p453 = scmp.ne.s32.totalorder %s445, %s447
      %p454 = scmp.eq.s32.totalorder %s33, 3
      %p455 = por %p453, %p454
      %p456 = scmp.ne.s32.totalorder %s447, %s448
      %p457 = scmp.eq.s32.totalorder %s33, 0
      %p458 = por %p456, %p457
      %p459 = scmp.ne.s32.totalorder %s447, %s448
      %p460 = scmp.eq.s32.totalorder %s34, 3
      %p461 = por %p459, %p460
      %p463 = scmp.ne.s32.totalorder %s448, %s462
      %p464 = scmp.eq.s32.totalorder %s34, 0
      %p465 = por %p463, %p464
      %s466 = ssub.s32 %s35, %s47
      %s467 = ssub.s32 %s36, %s43
      %s468 = sor.u32 %s466, %s467
      %p469 = scmp.eq.s32.totalorder %s468, 0
      %s471 = sadd.s32 %s470, 1
      %s472 = scalar_select %p469, %s470, %s471
      %p475 = pneg %p469
      %p476 = scmp.eq.s32.totalorder %s28, 3
      %p477 = por %p475, %p476
      %p478 = scmp.ne.s32.totalorder %s470, %s473
      %p479 = scmp.eq.s32.totalorder %s28, 0
      %p480 = por %p478, %p479
      %p481 = scmp.ne.s32.totalorder %s470, %s473
      %p482 = scmp.eq.s32.totalorder %s33, 3
      %p483 = por %p481, %p482
      %p484 = scmp.ne.s32.totalorder %s473, %s474
      %p485 = scmp.eq.s32.totalorder %s33, 0
      %p486 = por %p484, %p485
      %p487 = scmp.ne.s32.totalorder %s473, %s474
      %p488 = scmp.eq.s32.totalorder %s34, 3
      %p489 = por %p487, %p488
      %p491 = scmp.ne.s32.totalorder %s474, %s490
      %p492 = scmp.eq.s32.totalorder %s34, 0
      %p493 = por %p491, %p492
      %p494 = scmp.le.s32.totalorder 1, %s28
      %p495 = scmp.lt.s32.totalorder %s28, 5
      %p496 = pnand %p494, %p495
      %p497 = pneg %p496
      // Predicated region
      $region9: #{tpu_custom_call.1} parent=5 // pred_check
        _
      $region10: #{tpu_custom_call.1} parent=5 // pred_check_branch
        %499 = sbr.rel (%p496) target = $region12
      $region11: #{tpu_custom_call.1} parent=5 // pred_region
        %s500 = ssub.s32 %s28, 1
        // Predicated region
        $region13: #{tpu_custom_call.1} parent=11 // pred_check
          %p501 = pneg %p143
        $region14: #{tpu_custom_call.1} parent=11 // pred_check_branch
          %503 = sbr.rel (%p501) target = $region16
        $region15: #{tpu_custom_call.1} parent=11 // pred_region
          _
        $region16: #{tpu_custom_call.1} parent=11 // pred_fallthru
          _
        // Predicated region
        $region17: #{tpu_custom_call.1} parent=11 // pred_check
          %p504 = pneg %p164
        $region18: #{tpu_custom_call.1} parent=11 // pred_check_branch
          %506 = sbr.rel (%p504) target = $region20
        $region19: #{tpu_custom_call.1} parent=11 // pred_region
          _
        $region20: #{tpu_custom_call.1} parent=11 // pred_fallthru
          _
        // Predicated region
        $region21: #{tpu_custom_call.1} parent=11 // pred_check
          %p507 = pneg %p185
        $region22: #{tpu_custom_call.1} parent=11 // pred_check_branch
          %509 = sbr.rel (%p507) target = $region24
        $region23: #{tpu_custom_call.1} parent=11 // pred_region
          _
        $region24: #{tpu_custom_call.1} parent=11 // pred_fallthru
          _
        // Predicated region
        $region25: #{tpu_custom_call.1} parent=11 // pred_check
          %p510 = pneg %p206
        $region26: #{tpu_custom_call.1} parent=11 // pred_check_branch
          %512 = sbr.rel (%p510) target = $region28
        $region27: #{tpu_custom_call.1} parent=11 // pred_region
          _
        $region28: #{tpu_custom_call.1} parent=11 // pred_fallthru
          _
        // Predicated region
        $region29: #{tpu_custom_call.1} parent=11 // pred_check
          %p513 = pneg %p227
        $region30: #{tpu_custom_call.1} parent=11 // pred_check_branch
          %515 = sbr.rel (%p513) target = $region32
        $region31: #{tpu_custom_call.1} parent=11 // pred_region
          _
        $region32: #{tpu_custom_call.1} parent=11 // pred_fallthru
          _
        // Predicated region
        $region33: #{tpu_custom_call.1} parent=11 // pred_check
          %p516 = pneg %p248
        $region34: #{tpu_custom_call.1} parent=11 // pred_check_branch
          %518 = sbr.rel (%p516) target = $region36
        $region35: #{tpu_custom_call.1} parent=11 // pred_region
          _
        $region36: #{tpu_custom_call.1} parent=11 // pred_fallthru
          _
        // Predicated region
        $region37: #{tpu_custom_call.1} parent=11 // pred_check
          %p519 = pneg %p269
        $region38: #{tpu_custom_call.1} parent=11 // pred_check_branch
          %521 = sbr.rel (%p519) target = $region40
        $region39: #{tpu_custom_call.1} parent=11 // pred_region
          _
        $region40: #{tpu_custom_call.1} parent=11 // pred_fallthru
          _
        // Predicated region
        $region41: #{tpu_custom_call.1} parent=11 // pred_check
          %p522 = pneg %p290
        $region42: #{tpu_custom_call.1} parent=11 // pred_check_branch
          %524 = sbr.rel (%p522) target = $region44
        $region43: #{tpu_custom_call.1} parent=11 // pred_region
          _
        $region44: #{tpu_custom_call.1} parent=11 // pred_fallthru
          _
        // Predicated region
        $region45: #{tpu_custom_call.1} parent=11 // pred_check
          %p525 = pneg %p311
        $region46: #{tpu_custom_call.1} parent=11 // pred_check_branch
          %527 = sbr.rel (%p525) target = $region48
        $region47: #{tpu_custom_call.1} parent=11 // pred_region
          _
        $region48: #{tpu_custom_call.1} parent=11 // pred_fallthru
          _
        // Predicated region
        $region49: #{tpu_custom_call.1} parent=11 // pred_check
          %p528 = pneg %p332
        $region50: #{tpu_custom_call.1} parent=11 // pred_check_branch
          %530 = sbr.rel (%p528) target = $region52
        $region51: #{tpu_custom_call.1} parent=11 // pred_region
          _
        $region52: #{tpu_custom_call.1} parent=11 // pred_fallthru
          _
        // Predicated region
        $region53: #{tpu_custom_call.1} parent=11 // pred_check
          %p531 = pneg %p353
        $region54: #{tpu_custom_call.1} parent=11 // pred_check_branch
          %533 = sbr.rel (%p531) target = $region56
        $region55: #{tpu_custom_call.1} parent=11 // pred_region
          _
        $region56: #{tpu_custom_call.1} parent=11 // pred_fallthru
          _
        // Predicated region
        $region57: #{tpu_custom_call.1} parent=11 // pred_check
          %p534 = pneg %p374
        $region58: #{tpu_custom_call.1} parent=11 // pred_check_branch
          %536 = sbr.rel (%p534) target = $region60
        $region59: #{tpu_custom_call.1} parent=11 // pred_region
          _
        $region60: #{tpu_custom_call.1} parent=11 // pred_fallthru
          _
        // Predicated region
        $region61: #{tpu_custom_call.1} parent=11 // pred_check
          %p537 = pneg %p395
        $region62: #{tpu_custom_call.1} parent=11 // pred_check_branch
          %539 = sbr.rel (%p537) target = $region64
        $region63: #{tpu_custom_call.1} parent=11 // pred_region
          _
        $region64: #{tpu_custom_call.1} parent=11 // pred_fallthru
          _
        // Predicated region
        $region65: #{tpu_custom_call.1} parent=11 // pred_check
          %p540 = pneg %p416
        $region66: #{tpu_custom_call.1} parent=11 // pred_check_branch
          %542 = sbr.rel (%p540) target = $region68
        $region67: #{tpu_custom_call.1} parent=11 // pred_region
          _
        $region68: #{tpu_custom_call.1} parent=11 // pred_fallthru
          _
        // Predicated region
        $region69: #{tpu_custom_call.1} parent=11 // pred_check
          %p543 = pneg %p437
        $region70: #{tpu_custom_call.1} parent=11 // pred_check_branch
          %545 = sbr.rel (%p543) target = $region72
        $region71: #{tpu_custom_call.1} parent=11 // pred_region
          _
        $region72: #{tpu_custom_call.1} parent=11 // pred_fallthru
          _
        // Predicated region
        $region73: #{tpu_custom_call.1} parent=11 // pred_check
          %p546 = pneg %p458
        $region74: #{tpu_custom_call.1} parent=11 // pred_check_branch
          %548 = sbr.rel (%p546) target = $region76
        $region75: #{tpu_custom_call.1} parent=11 // pred_region
          _
        $region76: #{tpu_custom_call.1} parent=11 // pred_fallthru
          _
      $region12: #{tpu_custom_call.1} parent=5 // pred_fallthru
        _
      %p549 = scmp.lt.s32.totalorder %s28, 4
      // Predicated region
      $region77: #{tpu_custom_call.1} parent=5 // pred_check
        %p550 = pneg %p549
      $region78: #{tpu_custom_call.1} parent=5 // pred_check_branch
        %552 = sbr.rel (%p550) target = $region80
      $region79: #{tpu_custom_call.1} parent=5 // pred_region
        // Predicated region
        $region81: #{tpu_custom_call.1} parent=79 // pred_check
          %p553 = pneg %p62
        $region82: #{tpu_custom_call.1} parent=79 // pred_check_branch
          %555 = sbr.rel (%p553) target = $region84
        $region83: #{tpu_custom_call.1} parent=79 // pred_region
          %p556 = scmp.lt.s32.totalorder %s35, 1
          %s557 = scalar_select %p556, %s35, 1
          %p558 = scmp.lt.s32.totalorder %s36, 1
          %s559 = scalar_select %p558, %s36, 1
          %s560 = smul.addr %s557, 2
          %s561 = sadd.s32 %s559, %s560
          %s562 = smul.addr %s561, 8
          %s563 = scalar_lea.vmem %s0, %s562
        $region84: #{tpu_custom_call.1} parent=79 // pred_fallthru
          _
        // Predicated region
        $region85: #{tpu_custom_call.1} parent=79 // pred_check
          %p564 = pneg %p88
        $region86: #{tpu_custom_call.1} parent=79 // pred_check_branch
          %566 = sbr.rel (%p564) target = $region88
        $region87: #{tpu_custom_call.1} parent=79 // pred_region
          %p567 = scmp.lt.s32.totalorder %s35, 1
          %s568 = scalar_select %p567, %s35, 1
          %s569 = smul.addr %s568, 2
          %s570 = smul.addr %s569, 8
          %s571 = scalar_lea.vmem %s1, %s570
        $region88: #{tpu_custom_call.1} parent=79 // pred_fallthru
          _
        // Predicated region
        $region89: #{tpu_custom_call.1} parent=79 // pred_check
          %p572 = pneg %p116
        $region90: #{tpu_custom_call.1} parent=79 // pred_check_branch
          %574 = sbr.rel (%p572) target = $region92
        $region91: #{tpu_custom_call.1} parent=79 // pred_region
          %p575 = scmp.lt.s32.totalorder %s35, 1
          %s576 = scalar_select %p575, %s35, 1
          %p577 = scmp.lt.s32.totalorder %s36, 1
          %s578 = scalar_select %p577, %s36, 1
          %s579 = smul.addr %s576, 2
          %s580 = sadd.s32 %s578, %s579
          %s581 = smul.addr %s580, 8
          %s582 = scalar_lea.vmem %s2, %s581
        $region92: #{tpu_custom_call.1} parent=79 // pred_fallthru
          _
      $region80: #{tpu_custom_call.1} parent=5 // pred_fallthru
        _
      %p583 = scmp.le.s32.totalorder 1, %s28
      %p584 = scmp.lt.s32.totalorder %s28, 5
      %p585 = pnand %p583, %p584
      %p586 = pneg %p585
      // Predicated region
      $region93: #{tpu_custom_call.1} parent=5 // pred_check
        _
      $region94: #{tpu_custom_call.1} parent=5 // pred_check_branch
        %588 = sbr.rel (%p585) target = $region96
      $region95: #{tpu_custom_call.1} parent=5 // pred_region
        %s589 = ssub.s32 %s28, 1
        %p590 = scmp.lt.s32.totalorder %s37, 1
        %s591 = scalar_select %p590, %s37, 1
        %p592 = scmp.lt.s32.totalorder %s38, 1
        %s593 = scalar_select %p592, %s38, 1
        %s594 = smul.addr %s591, 2
        %s595 = sadd.s32 %s593, %s594
        %s596 = smul.addr %s595, 8
        %s597 = scalar_lea.vmem %s0, %s596
        %p598 = pneg %p68
        %p599 = pneg %p65
        %p600 = scmp.lt.s32.totalorder %s37, 1
        %s601 = scalar_select %p600, %s37, 1
        %s602 = smul.addr %s601, 2
        %s603 = smul.addr %s602, 8
        %s604 = scalar_lea.vmem %s1, %s603
        %p605 = pneg %p94
        %p606 = pneg %p91
        %p607 = scmp.lt.s32.totalorder %s37, 1
        %s608 = scalar_select %p607, %s37, 1
        %p609 = scmp.lt.s32.totalorder %s38, 1
        %s610 = scalar_select %p609, %s38, 1
        %s611 = smul.addr %s608, 2
        %s612 = sadd.s32 %s610, %s611
        %s613 = smul.addr %s612, 8
        %s614 = scalar_lea.vmem %s2, %s613
        %p615 = pneg %p122
        %p616 = pneg %p119
        %p617 = pneg %p143
        %p618 = pneg %p140
        %p619 = pneg %p164
        %p620 = pneg %p161
        %p621 = pneg %p185
        %p622 = pneg %p182
        %p623 = pneg %p206
        %p624 = pneg %p203
        %p625 = pneg %p227
        %p626 = pneg %p224
        %p627 = pneg %p248
        %p628 = pneg %p245
        %p629 = pneg %p269
        %p630 = pneg %p266
        %p631 = pneg %p290
        %p632 = pneg %p287
        %p633 = pneg %p311
        %p634 = pneg %p308
        %p635 = pneg %p332
        %p636 = pneg %p329
        %p637 = pneg %p353
        %p638 = pneg %p350
        %p639 = pneg %p374
        %p640 = pneg %p371
        %p641 = pneg %p395
        %p642 = pneg %p392
        %p643 = pneg %p416
        %p644 = pneg %p413
        %p645 = pneg %p437
        %p646 = pneg %p434
        %p647 = pneg %p458
        %p648 = pneg %p455
        %p649 = pneg %p486
        %p650 = pneg %p483
        %s651 = sand.u32 %s473, 1
        %s652 = scalar_lea.sflag [#allocation3], %s651
        %s653 = sand.u32 %s473, 1
        %s654 = smul.addr %s653, 8
        %s655 = scalar_lea.vmem [#allocation2], %s654
        %p656 = scmp.lt.s32.totalorder %s37, 1
        %s657 = scalar_select %p656, %s37, 1
        %p658 = scmp.lt.s32.totalorder %s38, 1
        %s659 = scalar_select %p658, %s38, 1
        %s660 = smul.addr %s657, 2
        %s661 = sadd.s32 %s659, %s660
        %s662 = smul.addr %s661, 8
        %s663 = scalar_lea.vmem %s0, %s662
        %p664 = scmp.lt.s32.totalorder %s37, 1
        %s665 = scalar_select %p664, %s37, 1
        %s666 = smul.addr %s665, 2
        %s667 = smul.addr %s666, 8
        %s668 = scalar_lea.vmem %s1, %s667
        %p669 = scmp.lt.s32.totalorder %s37, 1
        %s670 = scalar_select %p669, %s37, 1
        %p671 = scmp.lt.s32.totalorder %s38, 1
        %s672 = scalar_select %p671, %s38, 1
        %s673 = smul.addr %s670, 2
        %s674 = sadd.s32 %s672, %s673
        %s675 = smul.addr %s674, 8
        %s676 = scalar_lea.vmem %s2, %s675
        %v678 = vld [vmem:[%s663] sm:$0xff]
        %v679 = vpack.c.bf16 %v678, %v678
        %v680 = vld [vmem:[%s668] sm:$0xff]
        %v681 = vld [vmem:[%s668 + $0x8] sm:$0xff]
        %v682 = vpack.c.bf16 %v681, %v680
        %v683 = vld [vmem:[%s676] sm:$0xff]
        %v684 = vld [vmem:[%s3] sm:$0xf]
        %v685 = vld [vmem:[%s3 + $0x4] sm:$0xf]
        %v686 = vld [vmem:[%s3 + $0x8] sm:$0xf]
        %v687 = vld [vmem:[%s3 + $0xc] sm:$0xf]
        %v688 = vld [vmem:[%s4] sm:$0x1]
        %v690 = vlaneseq
        %v691 = vshrl.u32 %v690, 7
        %v692 = vsub.s32 0, %v691
        %v693 = vrot.slane %v688, %v692
        %v699 = vunpack.c.l.b16 %v684
        %v700 = vunpack.c.l.b16 %v685
        %v701 = vunpack.c.l.b16 %v686
        %v702 = vunpack.c.l.b16 %v687
        %v703 = vpack.c.b16 %v700, %v699
        %v704 = vpack.c.b16 %v702, %v701
        %vm707 = vcmask 261120
        %v709 = vsel %vm707, %v679, 0
        %711 = vmatprep.subr.bf16.mxu0 0
        %712 = vmatpush1.bf16.msra.mxu0 %v703
        %713 = vmatprep.subr.bf16.mxu0 0
        %714 = vmatpush1.bf16.msra.mxu0 %v704
        %715 = vmatprep.subr.bf16.mxu0 0
        %716 = vmatpush1.bf16.msra.mxu0 0
        %717 = vmatprep.subr.bf16.mxu0 0
        %718 = vmatpush1.bf16.msra.mxu0 0
        %719 = vmatprep.subr.bf16.mxu0 0
        %720 = vmatpush1.bf16.msra.mxu0 0
        %721 = vmatprep.subr.bf16.mxu0 0
        %722 = vmatpush1.bf16.msra.mxu0 0
        %723 = vmatprep.subr.bf16.mxu0 0
        %724 = vmatpush1.bf16.msra.mxu0 0
        %725 = vmatprep.subr.bf16.mxu0 0
        %726 = vmatpush1.bf16.msra.mxu0 0
        %727 = vmatprep.subr.bf16.mxu0 0
        %728 = vmatpush1.bf16.msra.mxu0 0
        %729 = vmatprep.subr.bf16.mxu0 0
        %730 = vmatpush1.bf16.msra.mxu0 0
        %731 = vmatprep.subr.bf16.mxu0 0
        %732 = vmatpush1.bf16.msra.mxu0 0
        %733 = vmatprep.subr.bf16.mxu0 0
        %734 = vmatpush1.bf16.msra.mxu0 0
        %735 = vmatprep.subr.bf16.mxu0 0
        %736 = vmatpush1.bf16.msra.mxu0 0
        %737 = vmatprep.subr.bf16.mxu0 0
        %738 = vmatpush1.bf16.msra.mxu0 0
        %739 = vmatprep.subr.bf16.mxu0 0
        %740 = vmatpush1.bf16.msra.mxu0 0
        %741 = vmatprep.subr.bf16.mxu0 0
        %742 = vmatpush1.bf16.msra.mxu0 0
        %743 = vmatprep.mubr.bf16.mxu0 0
        %744 = vmatmul.mubr.bf16.gmra.mrb[0].mxu0 %v709
        %v745 = vpop.f32.mrb[0].mxu0
        %v746 = vadd.f32 %v693, %v745
        %v747 = vpop.f32.mrb[0].mxu0
        %v748 = vpop.f32.mrb[0].mxu0
        %v749 = vpop.f32.mrb[0].mxu0
        %750 = vdwg.mxu0
        %v751 = vld [vmem:[%s5] sm:$0xf]
        %v752 = vld [vmem:[%s5 + $0x4] sm:$0xf]
        %v753 = vld [vmem:[%s5 + $0x8] sm:$0xf]
        %v754 = vld [vmem:[%s5 + $0xc] sm:$0xf]
        %v755 = vld [vmem:[%s6] sm:$0x1]
        %v757 = vlaneseq
        %v758 = vshrl.u32 %v757, 7
        %v759 = vsub.s32 0, %v758
        %v760 = vrot.slane %v755, %v759
        %v766 = vunpack.c.l.b16 %v751
        %v767 = vunpack.c.l.b16 %v752
        %v768 = vunpack.c.l.b16 %v753
        %v769 = vunpack.c.l.b16 %v754
        %v770 = vpack.c.b16 %v767, %v766
        %v771 = vpack.c.b16 %v769, %v768
        %v775 = vsel %vm707, %v682, 0
        %777 = vmatprep.subr.bf16.mxu0 0
        %778 = vmatpush1.bf16.msra.mxu0 %v770
        %779 = vmatprep.subr.bf16.mxu0 0
        %780 = vmatpush1.bf16.msra.mxu0 %v771
        %781 = vmatprep.subr.bf16.mxu0 0
        %782 = vmatpush1.bf16.msra.mxu0 0
        %783 = vmatprep.subr.bf16.mxu0 0
        %784 = vmatpush1.bf16.msra.mxu0 0
        %785 = vmatprep.subr.bf16.mxu0 0
        %786 = vmatpush1.bf16.msra.mxu0 0
        %787 = vmatprep.subr.bf16.mxu0 0
        %788 = vmatpush1.bf16.msra.mxu0 0
        %789 = vmatprep.subr.bf16.mxu0 0
        %790 = vmatpush1.bf16.msra.mxu0 0
        %791 = vmatprep.subr.bf16.mxu0 0
        %792 = vmatpush1.bf16.msra.mxu0 0
        %793 = vmatprep.subr.bf16.mxu0 0
        %794 = vmatpush1.bf16.msra.mxu0 0
        %795 = vmatprep.subr.bf16.mxu0 0
        %796 = vmatpush1.bf16.msra.mxu0 0
        %797 = vmatprep.subr.bf16.mxu0 0
        %798 = vmatpush1.bf16.msra.mxu0 0
        %799 = vmatprep.subr.bf16.mxu0 0
        %800 = vmatpush1.bf16.msra.mxu0 0
        %801 = vmatprep.subr.bf16.mxu0 0
        %802 = vmatpush1.bf16.msra.mxu0 0
        %803 = vmatprep.subr.bf16.mxu0 0
        %804 = vmatpush1.bf16.msra.mxu0 0
        %805 = vmatprep.subr.bf16.mxu0 0
        %806 = vmatpush1.bf16.msra.mxu0 0
        %807 = vmatprep.subr.bf16.mxu0 0
        %808 = vmatpush1.bf16.msra.mxu0 0
        %809 = vmatprep.mubr.bf16.mxu0 0
        %810 = vmatmul.mubr.bf16.gmra.mrb[0].mxu0 %v775
        %v811 = vpop.f32.mrb[0].mxu0
        %v812 = vadd.f32 %v760, %v811
        %v813 = vpop.f32.mrb[0].mxu0
        %v814 = vpop.f32.mrb[0].mxu0
        %v815 = vadd.f32 %v760, %v814
        %v816 = vpop.f32.mrb[0].mxu0
        %817 = vdwg.mxu0
        %v818 = vld [vmem:[%s7] sm:$0xf]
        %v819 = vld [vmem:[%s7 + $0x4] sm:$0xf]
        %v820 = vld [vmem:[%s7 + $0x8] sm:$0xf]
        %v821 = vld [vmem:[%s7 + $0xc] sm:$0xf]
        %v822 = vld [vmem:[%s8] sm:$0x1]
        %v824 = vlaneseq
        %v825 = vshrl.u32 %v824, 7
        %v826 = vsub.s32 0, %v825
        %v827 = vrot.slane %v822, %v826
        %v833 = vunpack.c.l.b16 %v818
        %v834 = vunpack.c.l.b16 %v819
        %v835 = vunpack.c.l.b16 %v820
        %v836 = vunpack.c.l.b16 %v821
        %v837 = vpack.c.b16 %v834, %v833
        %v838 = vpack.c.b16 %v836, %v835
        %841 = vmatprep.subr.bf16.mxu0 0
        %842 = vmatpush1.bf16.msra.mxu0 %v837
        %843 = vmatprep.subr.bf16.mxu0 0
        %844 = vmatpush1.bf16.msra.mxu0 %v838
        %845 = vmatprep.subr.bf16.mxu0 0
        %846 = vmatpush1.bf16.msra.mxu0 0
        %847 = vmatprep.subr.bf16.mxu0 0
        %848 = vmatpush1.bf16.msra.mxu0 0
        %849 = vmatprep.subr.bf16.mxu0 0
        %850 = vmatpush1.bf16.msra.mxu0 0
        %851 = vmatprep.subr.bf16.mxu0 0
        %852 = vmatpush1.bf16.msra.mxu0 0
        %853 = vmatprep.subr.bf16.mxu0 0
        %854 = vmatpush1.bf16.msra.mxu0 0
        %855 = vmatprep.subr.bf16.mxu0 0
        %856 = vmatpush1.bf16.msra.mxu0 0
        %857 = vmatprep.subr.bf16.mxu0 0
        %858 = vmatpush1.bf16.msra.mxu0 0
        %859 = vmatprep.subr.bf16.mxu0 0
        %860 = vmatpush1.bf16.msra.mxu0 0
        %861 = vmatprep.subr.bf16.mxu0 0
        %862 = vmatpush1.bf16.msra.mxu0 0
        %863 = vmatprep.subr.bf16.mxu0 0
        %864 = vmatpush1.bf16.msra.mxu0 0
        %865 = vmatprep.subr.bf16.mxu0 0
        %866 = vmatpush1.bf16.msra.mxu0 0
        %867 = vmatprep.subr.bf16.mxu0 0
        %868 = vmatpush1.bf16.msra.mxu0 0
        %869 = vmatprep.subr.bf16.mxu0 0
        %870 = vmatpush1.bf16.msra.mxu0 0
        %871 = vmatprep.subr.bf16.mxu0 0
        %872 = vmatpush1.bf16.msra.mxu0 0
        %873 = vmatprep.mubr.bf16.mxu0 0
        %874 = vmatmul.mubr.bf16.gmra.mrb[0].mxu0 %v775
        %v875 = vpop.f32.mrb[0].mxu0
        %v876 = vadd.f32 %v827, %v875
        %v877 = vpop.f32.mrb[0].mxu0
        %v878 = vpop.f32.mrb[0].mxu0
        %v879 = vadd.f32 %v827, %v878
        %v880 = vpop.f32.mrb[0].mxu0
        %881 = vdwg.mxu0
        %v882 = vmul.f32 %v746, 0.35355338
        %v883 = vpack.c.bf16 %v882, %v882
        %v884 = vpack.c.bf16 %v815, %v812
        %vm885 = vcmask 64512
        %v887 = vsel %vm885, %v883, 0
        %v890 = vsel %vm885, %v884, 0
        %892 = vmatprep.subr.bf16.mxu0 0
        %893 = vmatpush1.bf16.xpose.msra.mxu0 %v890
        %894 = vmatprep.subr.bf16.mxu0 0
        %895 = vmatpush1.bf16.xpose.msra.mxu0 0
        %896 = vmatprep.subr.bf16.mxu0 0
        %897 = vmatpush1.bf16.xpose.msra.mxu0 0
        %898 = vmatprep.subr.bf16.mxu0 0
        %899 = vmatpush1.bf16.xpose.msra.mxu0 0
        %900 = vmatprep.subr.bf16.mxu0 0
        %901 = vmatpush1.bf16.xpose.msra.mxu0 0
        %902 = vmatprep.subr.bf16.mxu0 0
        %903 = vmatpush1.bf16.xpose.msra.mxu0 0
        %904 = vmatprep.subr.bf16.mxu0 0
        %905 = vmatpush1.bf16.xpose.msra.mxu0 0
        %906 = vmatprep.subr.bf16.mxu0 0
        %907 = vmatpush1.bf16.xpose.msra.mxu0 0
        %908 = vmatprep.subr.bf16.mxu0 0
        %909 = vmatpush1.bf16.xpose.msra.mxu0 0
        %910 = vmatprep.subr.bf16.mxu0 0
        %911 = vmatpush1.bf16.xpose.msra.mxu0 0
        %912 = vmatprep.subr.bf16.mxu0 0
        %913 = vmatpush1.bf16.xpose.msra.mxu0 0
        %914 = vmatprep.subr.bf16.mxu0 0
        %915 = vmatpush1.bf16.xpose.msra.mxu0 0
        %916 = vmatprep.subr.bf16.mxu0 0
        %917 = vmatpush1.bf16.xpose.msra.mxu0 0
        %918 = vmatprep.subr.bf16.mxu0 0
        %919 = vmatpush1.bf16.xpose.msra.mxu0 0
        %920 = vmatprep.subr.bf16.mxu0 0
        %921 = vmatpush1.bf16.xpose.msra.mxu0 0
        %922 = vmatprep.subr.bf16.mxu0 0
        %923 = vmatpush1.bf16.xpose.msra.mxu0 0
        %924 = vmatprep.mubr.bf16.mxu0 0
        %925 = vmatmul.mubr.bf16.gmra.mrb[0].mxu0 %v887
        %v926 = vpop.f32.mrb[0].mxu0
        %v927 = vadd.f32 %v683, %v926
        %v928 = vpop.f32.mrb[0].mxu0
        %v929 = vpop.f32.mrb[0].mxu0
        %v930 = vpop.f32.mrb[0].mxu0
        %931 = vdwg.mxu0
        %vm932 = vcmask 130048
        %v933 = vsel %vm932, %v927, -inf
        %934 = vmax.xlane.f32.xlu0 %v933
        %v935 = vpop.xlane.xlu0 %934
        %v936 = vsub.f32 %v927, %v935
        %v937 = vmul.f32 %v936, 1.442695
        %v938 = vpow.pop %v937
        %v939 = vsel %vm932, %v938, 0.0
        %940 = vadd.xlane.f32.xlu0 %v939
        %v941 = vpop.xlane.xlu0 %940
        %v942 = vrcp.pop %v941
        %v943 = vmul.f32 %v938, %v942
        %v944 = vpack.c.bf16 %v943, %v943
        %v945 = vpack.c.bf16 %v879, %v876
        %v947 = vsel %vm932, %v944, 0
        %949 = vmatprep.subr.bf16.mxu0 0
        %950 = vmatpush1.bf16.msra.mxu0 %v945
        %951 = vmatprep.subr.bf16.mxu0 0
        %952 = vmatpush1.bf16.msra.mxu0 0
        %953 = vmatprep.subr.bf16.mxu0 0
        %954 = vmatpush1.bf16.msra.mxu0 0
        %955 = vmatprep.subr.bf16.mxu0 0
        %956 = vmatpush1.bf16.msra.mxu0 0
        %957 = vmatprep.subr.bf16.mxu0 0
        %958 = vmatpush1.bf16.msra.mxu0 0
        %959 = vmatprep.subr.bf16.mxu0 0
        %960 = vmatpush1.bf16.msra.mxu0 0
        %961 = vmatprep.subr.bf16.mxu0 0
        %962 = vmatpush1.bf16.msra.mxu0 0
        %963 = vmatprep.subr.bf16.mxu0 0
        %964 = vmatpush1.bf16.msra.mxu0 0
        %965 = vmatprep.subr.bf16.mxu0 0
        %966 = vmatpush1.bf16.msra.mxu0 0
        %967 = vmatprep.subr.bf16.mxu0 0
        %968 = vmatpush1.bf16.msra.mxu0 0
        %969 = vmatprep.subr.bf16.mxu0 0
        %970 = vmatpush1.bf16.msra.mxu0 0
        %971 = vmatprep.subr.bf16.mxu0 0
        %972 = vmatpush1.bf16.msra.mxu0 0
        %973 = vmatprep.subr.bf16.mxu0 0
        %974 = vmatpush1.bf16.msra.mxu0 0
        %975 = vmatprep.subr.bf16.mxu0 0
        %976 = vmatpush1.bf16.msra.mxu0 0
        %977 = vmatprep.subr.bf16.mxu0 0
        %978 = vmatpush1.bf16.msra.mxu0 0
        %979 = vmatprep.subr.bf16.mxu0 0
        %980 = vmatpush1.bf16.msra.mxu0 0
        %981 = vmatprep.mubr.bf16.mxu0 0
        %982 = vmatmul.mubr.bf16.gmra.mrb[0].mxu0 %v947
        %v983 = vpop.f32.mrb[0].mxu0
        %v984 = vadd.f32 0.0, %v983
        %v985 = vpop.f32.mrb[0].mxu0
        %v986 = vpop.f32.mrb[0].mxu0
        %v987 = vpop.f32.mrb[0].mxu0
        %988 = vdwg.mxu0
        %s989 = scalar_lea.vmem %s3, 16
        %v990 = vld [vmem:[%s989] sm:$0xf]
        %v991 = vld [vmem:[%s989 + $0x4] sm:$0xf]
        %v992 = vld [vmem:[%s989 + $0x8] sm:$0xf]
        %v993 = vld [vmem:[%s989 + $0xc] sm:$0xf]
        %s994 = scalar_lea.vmem %s4, 1
        %v995 = vld [vmem:[%s994] sm:$0x1]
        %v997 = vlaneseq
        %v998 = vshrl.u32 %v997, 7
        %v999 = vsub.s32 0, %v998
        %v1000 = vrot.slane %v995, %v999
        %v1006 = vunpack.c.l.b16 %v990
        %v1007 = vunpack.c.l.b16 %v991
        %v1008 = vunpack.c.l.b16 %v992
        %v1009 = vunpack.c.l.b16 %v993
        %v1010 = vpack.c.b16 %v1007, %v1006
        %v1011 = vpack.c.b16 %v1009, %v1008
        %1014 = vmatprep.subr.bf16.mxu0 0
        %1015 = vmatpush1.bf16.msra.mxu0 %v1010
        %1016 = vmatprep.subr.bf16.mxu0 0
        %1017 = vmatpush1.bf16.msra.mxu0 %v1011
        %1018 = vmatprep.subr.bf16.mxu0 0
        %1019 = vmatpush1.bf16.msra.mxu0 0
        %1020 = vmatprep.subr.bf16.mxu0 0
        %1021 = vmatpush1.bf16.msra.mxu0 0
        %1022 = vmatprep.subr.bf16.mxu0 0
        %1023 = vmatpush1.bf16.msra.mxu0 0
        %1024 = vmatprep.subr.bf16.mxu0 0
        %1025 = vmatpush1.bf16.msra.mxu0 0
        %1026 = vmatprep.subr.bf16.mxu0 0
        %1027 = vmatpush1.bf16.msra.mxu0 0
        %1028 = vmatprep.subr.bf16.mxu0 0
        %1029 = vmatpush1.bf16.msra.mxu0 0
        %1030 = vmatprep.subr.bf16.mxu0 0
        %1031 = vmatpush1.bf16.msra.mxu0 0
        %1032 = vmatprep.subr.bf16.mxu0 0
        %1033 = vmatpush1.bf16.msra.mxu0 0
        %1034 = vmatprep.subr.bf16.mxu0 0
        %1035 = vmatpush1.bf16.msra.mxu0 0
        %1036 = vmatprep.subr.bf16.mxu0 0
        %1037 = vmatpush1.bf16.msra.mxu0 0
        %1038 = vmatprep.subr.bf16.mxu0 0
        %1039 = vmatpush1.bf16.msra.mxu0 0
        %1040 = vmatprep.subr.bf16.mxu0 0
        %1041 = vmatpush1.bf16.msra.mxu0 0
        %1042 = vmatprep.subr.bf16.mxu0 0
        %1043 = vmatpush1.bf16.msra.mxu0 0
        %1044 = vmatprep.subr.bf16.mxu0 0
        %1045 = vmatpush1.bf16.msra.mxu0 0
        %1046 = vmatprep.mubr.bf16.mxu0 0
        %1047 = vmatmul.mubr.bf16.gmra.mrb[0].mxu0 %v709
        %v1048 = vpop.f32.mrb[0].mxu0
        %v1049 = vadd.f32 %v1000, %v1048
        %v1050 = vpop.f32.mrb[0].mxu0
        %v1051 = vpop.f32.mrb[0].mxu0
        %v1052 = vpop.f32.mrb[0].mxu0
        %1053 = vdwg.mxu0
        %s1054 = scalar_lea.vmem %s5, 16
        %v1055 = vld [vmem:[%s1054] sm:$0xf]
        %v1056 = vld [vmem:[%s1054 + $0x4] sm:$0xf]
        %v1057 = vld [vmem:[%s1054 + $0x8] sm:$0xf]
        %v1058 = vld [vmem:[%s1054 + $0xc] sm:$0xf]
        %s1059 = scalar_lea.vmem %s6, 1
        %v1060 = vld [vmem:[%s1059] sm:$0x1]
        %v1062 = vlaneseq
        %v1063 = vshrl.u32 %v1062, 7
        %v1064 = vsub.s32 0, %v1063
        %v1065 = vrot.slane %v1060, %v1064
        %v1071 = vunpack.c.l.b16 %v1055
        %v1072 = vunpack.c.l.b16 %v1056
        %v1073 = vunpack.c.l.b16 %v1057
        %v1074 = vunpack.c.l.b16 %v1058
        %v1075 = vpack.c.b16 %v1072, %v1071
        %v1076 = vpack.c.b16 %v1074, %v1073
        %1079 = vmatprep.subr.bf16.mxu0 0
        %1080 = vmatpush1.bf16.msra.mxu0 %v1075
        %1081 = vmatprep.subr.bf16.mxu0 0
        %1082 = vmatpush1.bf16.msra.mxu0 %v1076
        %1083 = vmatprep.subr.bf16.mxu0 0
        %1084 = vmatpush1.bf16.msra.mxu0 0
        %1085 = vmatprep.subr.bf16.mxu0 0
        %1086 = vmatpush1.bf16.msra.mxu0 0
        %1087 = vmatprep.subr.bf16.mxu0 0
        %1088 = vmatpush1.bf16.msra.mxu0 0
        %1089 = vmatprep.subr.bf16.mxu0 0
        %1090 = vmatpush1.bf16.msra.mxu0 0
        %1091 = vmatprep.subr.bf16.mxu0 0
        %1092 = vmatpush1.bf16.msra.mxu0 0
        %1093 = vmatprep.subr.bf16.mxu0 0
        %1094 = vmatpush1.bf16.msra.mxu0 0
        %1095 = vmatprep.subr.bf16.mxu0 0
        %1096 = vmatpush1.bf16.msra.mxu0 0
        %1097 = vmatprep.subr.bf16.mxu0 0
        %1098 = vmatpush1.bf16.msra.mxu0 0
        %1099 = vmatprep.subr.bf16.mxu0 0
        %1100 = vmatpush1.bf16.msra.mxu0 0
        %1101 = vmatprep.subr.bf16.mxu0 0
        %1102 = vmatpush1.bf16.msra.mxu0 0
        %1103 = vmatprep.subr.bf16.mxu0 0
        %1104 = vmatpush1.bf16.msra.mxu0 0
        %1105 = vmatprep.subr.bf16.mxu0 0
        %1106 = vmatpush1.bf16.msra.mxu0 0
        %1107 = vmatprep.subr.bf16.mxu0 0
        %1108 = vmatpush1.bf16.msra.mxu0 0
        %1109 = vmatprep.subr.bf16.mxu0 0
        %1110 = vmatpush1.bf16.msra.mxu0 0
        %1111 = vmatprep.mubr.bf16.mxu0 0
        %1112 = vmatmul.mubr.bf16.gmra.mrb[0].mxu0 %v775
        %v1113 = vpop.f32.mrb[0].mxu0
        %v1114 = vadd.f32 %v1065, %v1113
        %v1115 = vpop.f32.mrb[0].mxu0
        %v1116 = vpop.f32.mrb[0].mxu0
        %v1117 = vadd.f32 %v1065, %v1116
        %v1118 = vpop.f32.mrb[0].mxu0
        %1119 = vdwg.mxu0
        %s1120 = scalar_lea.vmem %s7, 16
        %v1121 = vld [vmem:[%s1120] sm:$0xf]
        %v1122 = vld [vmem:[%s1120 + $0x4] sm:$0xf]
        %v1123 = vld [vmem:[%s1120 + $0x8] sm:$0xf]
        %v1124 = vld [vmem:[%s1120 + $0xc] sm:$0xf]
        %s1125 = scalar_lea.vmem %s8, 1
        %v1126 = vld [vmem:[%s1125] sm:$0x1]
        %v1128 = vlaneseq
        %v1129 = vshrl.u32 %v1128, 7
        %v1130 = vsub.s32 0, %v1129
        %v1131 = vrot.slane %v1126, %v1130
        %v1137 = vunpack.c.l.b16 %v1121
        %v1138 = vunpack.c.l.b16 %v1122
        %v1139 = vunpack.c.l.b16 %v1123
        %v1140 = vunpack.c.l.b16 %v1124
        %v1141 = vpack.c.b16 %v1138, %v1137
        %v1142 = vpack.c.b16 %v1140, %v1139
        %1145 = vmatprep.subr.bf16.mxu0 0
        %1146 = vmatpush1.bf16.msra.mxu0 %v1141
        %1147 = vmatprep.subr.bf16.mxu0 0
        %1148 = vmatpush1.bf16.msra.mxu0 %v1142
        %1149 = vmatprep.subr.bf16.mxu0 0
        %1150 = vmatpush1.bf16.msra.mxu0 0
        %1151 = vmatprep.subr.bf16.mxu0 0
        %1152 = vmatpush1.bf16.msra.mxu0 0
        %1153 = vmatprep.subr.bf16.mxu0 0
        %1154 = vmatpush1.bf16.msra.mxu0 0
        %1155 = vmatprep.subr.bf16.mxu0 0
        %1156 = vmatpush1.bf16.msra.mxu0 0
        %1157 = vmatprep.subr.bf16.mxu0 0
        %1158 = vmatpush1.bf16.msra.mxu0 0
        %1159 = vmatprep.subr.bf16.mxu0 0
        %1160 = vmatpush1.bf16.msra.mxu0 0
        %1161 = vmatprep.subr.bf16.mxu0 0
        %1162 = vmatpush1.bf16.msra.mxu0 0
        %1163 = vmatprep.subr.bf16.mxu0 0
        %1164 = vmatpush1.bf16.msra.mxu0 0
        %1165 = vmatprep.subr.bf16.mxu0 0
        %1166 = vmatpush1.bf16.msra.mxu0 0
        %1167 = vmatprep.subr.bf16.mxu0 0
        %1168 = vmatpush1.bf16.msra.mxu0 0
        %1169 = vmatprep.subr.bf16.mxu0 0
        %1170 = vmatpush1.bf16.msra.mxu0 0
        %1171 = vmatprep.subr.bf16.mxu0 0
        %1172 = vmatpush1.bf16.msra.mxu0 0
        %1173 = vmatprep.subr.bf16.mxu0 0
        %1174 = vmatpush1.bf16.msra.mxu0 0
        %1175 = vmatprep.subr.bf16.mxu0 0
        %1176 = vmatpush1.bf16.msra.mxu0 0
        %1177 = vmatprep.mubr.bf16.mxu0 0
        %1178 = vmatmul.mubr.bf16.gmra.mrb[0].mxu0 %v775
        %v1179 = vpop.f32.mrb[0].mxu0
        %v1180 = vadd.f32 %v1131, %v1179
        %v1181 = vpop.f32.mrb[0].mxu0
        %v1182 = vpop.f32.mrb[0].mxu0
        %v1183 = vadd.f32 %v1131, %v1182
        %v1184 = vpop.f32.mrb[0].mxu0
        %1185 = vdwg.mxu0
        %v1186 = vmul.f32 %v1049, 0.35355338
        %v1187 = vpack.c.bf16 %v1186, %v1186
        %v1188 = vpack.c.bf16 %v1117, %v1114
        %v1190 = vsel %vm885, %v1187, 0
        %v1193 = vsel %vm885, %v1188, 0
        %1195 = vmatprep.subr.bf16.mxu0 0
        %1196 = vmatpush1.bf16.xpose.msra.mxu0 %v1193
        %1197 = vmatprep.subr.bf16.mxu0 0
        %1198 = vmatpush1.bf16.xpose.msra.mxu0 0
        %1199 = vmatprep.subr.bf16.mxu0 0
        %1200 = vmatpush1.bf16.xpose.msra.mxu0 0
        %1201 = vmatprep.subr.bf16.mxu0 0
        %1202 = vmatpush1.bf16.xpose.msra.mxu0 0
        %1203 = vmatprep.subr.bf16.mxu0 0
        %1204 = vmatpush1.bf16.xpose.msra.mxu0 0
        %1205 = vmatprep.subr.bf16.mxu0 0
        %1206 = vmatpush1.bf16.xpose.msra.mxu0 0
        %1207 = vmatprep.subr.bf16.mxu0 0
        %1208 = vmatpush1.bf16.xpose.msra.mxu0 0
        %1209 = vmatprep.subr.bf16.mxu0 0
        %1210 = vmatpush1.bf16.xpose.msra.mxu0 0
        %1211 = vmatprep.subr.bf16.mxu0 0
        %1212 = vmatpush1.bf16.xpose.msra.mxu0 0
        %1213 = vmatprep.subr.bf16.mxu0 0
        %1214 = vmatpush1.bf16.xpose.msra.mxu0 0
        %1215 = vmatprep.subr.bf16.mxu0 0
        %1216 = vmatpush1.bf16.xpose.msra.mxu0 0
        %1217 = vmatprep.subr.bf16.mxu0 0
        %1218 = vmatpush1.bf16.xpose.msra.mxu0 0
        %1219 = vmatprep.subr.bf16.mxu0 0
        %1220 = vmatpush1.bf16.xpose.msra.mxu0 0
        %1221 = vmatprep.subr.bf16.mxu0 0
        %1222 = vmatpush1.bf16.xpose.msra.mxu0 0
        %1223 = vmatprep.subr.bf16.mxu0 0
        %1224 = vmatpush1.bf16.xpose.msra.mxu0 0
        %1225 = vmatprep.subr.bf16.mxu0 0
        %1226 = vmatpush1.bf16.xpose.msra.mxu0 0
        %1227 = vmatprep.mubr.bf16.mxu0 0
        %1228 = vmatmul.mubr.bf16.gmra.mrb[0].mxu0 %v1190
        %v1229 = vpop.f32.mrb[0].mxu0
        %v1230 = vadd.f32 %v683, %v1229
        %v1231 = vpop.f32.mrb[0].mxu0
        %v1232 = vpop.f32.mrb[0].mxu0
        %v1233 = vpop.f32.mrb[0].mxu0
        %1234 = vdwg.mxu0
        %v1235 = vsel %vm932, %v1230, -inf
        %1236 = vmax.xlane.f32.xlu0 %v1235
        %v1237 = vpop.xlane.xlu0 %1236
        %v1238 = vsub.f32 %v1230, %v1237
        %v1239 = vmul.f32 %v1238, 1.442695
        %v1240 = vpow.pop %v1239
        %v1241 = vsel %vm932, %v1240, 0.0
        %1242 = vadd.xlane.f32.xlu0 %v1241
        %v1243 = vpop.xlane.xlu0 %1242
        %v1244 = vrcp.pop %v1243
        %v1245 = vmul.f32 %v1240, %v1244
        %v1246 = vpack.c.bf16 %v1245, %v1245
        %v1247 = vpack.c.bf16 %v1183, %v1180
        %v1249 = vsel %vm932, %v1246, 0
        %1251 = vmatprep.subr.bf16.mxu0 0
        %1252 = vmatpush1.bf16.msra.mxu0 %v1247
        %1253 = vmatprep.subr.bf16.mxu0 0
        %1254 = vmatpush1.bf16.msra.mxu0 0
        %1255 = vmatprep.subr.bf16.mxu0 0
        %1256 = vmatpush1.bf16.msra.mxu0 0
        %1257 = vmatprep.subr.bf16.mxu0 0
        %1258 = vmatpush1.bf16.msra.mxu0 0
        %1259 = vmatprep.subr.bf16.mxu0 0
        %1260 = vmatpush1.bf16.msra.mxu0 0
        %1261 = vmatprep.subr.bf16.mxu0 0
        %1262 = vmatpush1.bf16.msra.mxu0 0
        %1263 = vmatprep.subr.bf16.mxu0 0
        %1264 = vmatpush1.bf16.msra.mxu0 0
        %1265 = vmatprep.subr.bf16.mxu0 0
        %1266 = vmatpush1.bf16.msra.mxu0 0
        %1267 = vmatprep.subr.bf16.mxu0 0
        %1268 = vmatpush1.bf16.msra.mxu0 0
        %1269 = vmatprep.subr.bf16.mxu0 0
        %1270 = vmatpush1.bf16.msra.mxu0 0
        %1271 = vmatprep.subr.bf16.mxu0 0
        %1272 = vmatpush1.bf16.msra.mxu0 0
        %1273 = vmatprep.subr.bf16.mxu0 0
        %1274 = vmatpush1.bf16.msra.mxu0 0
        %1275 = vmatprep.subr.bf16.mxu0 0
        %1276 = vmatpush1.bf16.msra.mxu0 0
        %1277 = vmatprep.subr.bf16.mxu0 0
        %1278 = vmatpush1.bf16.msra.mxu0 0
        %1279 = vmatprep.subr.bf16.mxu0 0
        %1280 = vmatpush1.bf16.msra.mxu0 0
        %1281 = vmatprep.subr.bf16.mxu0 0
        %1282 = vmatpush1.bf16.msra.mxu0 0
        %1283 = vmatprep.mubr.bf16.mxu0 0
        %1284 = vmatmul.mubr.bf16.gmra.mrb[0].mxu0 %v1249
        %v1285 = vpop.f32.mrb[0].mxu0
        %v1286 = vadd.f32 0.0, %v1285
        %v1287 = vpop.f32.mrb[0].mxu0
        %v1288 = vpop.f32.mrb[0].mxu0
        %v1289 = vpop.f32.mrb[0].mxu0
        %1290 = vdwg.mxu0
        %s1291 = scalar_lea.vmem %s3, 32
        %v1292 = vld [vmem:[%s1291] sm:$0xf]
        %v1293 = vld [vmem:[%s1291 + $0x4] sm:$0xf]
        %v1294 = vld [vmem:[%s1291 + $0x8] sm:$0xf]
        %v1295 = vld [vmem:[%s1291 + $0xc] sm:$0xf]
        %s1296 = scalar_lea.vmem %s4, 2
        %v1297 = vld [vmem:[%s1296] sm:$0x1]
        %v1299 = vlaneseq
        %v1300 = vshrl.u32 %v1299, 7
        %v1301 = vsub.s32 0, %v1300
        %v1302 = vrot.slane %v1297, %v1301
        %v1308 = vunpack.c.l.b16 %v1292
        %v1309 = vunpack.c.l.b16 %v1293
        %v1310 = vunpack.c.l.b16 %v1294
        %v1311 = vunpack.c.l.b16 %v1295
        %v1312 = vpack.c.b16 %v1309, %v1308
        %v1313 = vpack.c.b16 %v1311, %v1310
        %1316 = vmatprep.subr.bf16.mxu0 0
        %1317 = vmatpush1.bf16.msra.mxu0 %v1312
        %1318 = vmatprep.subr.bf16.mxu0 0
        %1319 = vmatpush1.bf16.msra.mxu0 %v1313
        %1320 = vmatprep.subr.bf16.mxu0 0
        %1321 = vmatpush1.bf16.msra.mxu0 0
        %1322 = vmatprep.subr.bf16.mxu0 0
        %1323 = vmatpush1.bf16.msra.mxu0 0
        %1324 = vmatprep.subr.bf16.mxu0 0
        %1325 = vmatpush1.bf16.msra.mxu0 0
        %1326 = vmatprep.subr.bf16.mxu0 0
        %1327 = vmatpush1.bf16.msra.mxu0 0
        %1328 = vmatprep.subr.bf16.mxu0 0
        %1329 = vmatpush1.bf16.msra.mxu0 0
        %1330 = vmatprep.subr.bf16.mxu0 0
        %1331 = vmatpush1.bf16.msra.mxu0 0
        %1332 = vmatprep.subr.bf16.mxu0 0
        %1333 = vmatpush1.bf16.msra.mxu0 0
        %1334 = vmatprep.subr.bf16.mxu0 0
        %1335 = vmatpush1.bf16.msra.mxu0 0
        %1336 = vmatprep.subr.bf16.mxu0 0
        %1337 = vmatpush1.bf16.msra.mxu0 0
        %1338 = vmatprep.subr.bf16.mxu0 0
        %1339 = vmatpush1.bf16.msra.mxu0 0
        %1340 = vmatprep.subr.bf16.mxu0 0
        %1341 = vmatpush1.bf16.msra.mxu0 0
        %1342 = vmatprep.subr.bf16.mxu0 0
        %1343 = vmatpush1.bf16.msra.mxu0 0
        %1344 = vmatprep.subr.bf16.mxu0 0
        %1345 = vmatpush1.bf16.msra.mxu0 0
        %1346 = vmatprep.subr.bf16.mxu0 0
        %1347 = vmatpush1.bf16.msra.mxu0 0
        %1348 = vmatprep.mubr.bf16.mxu0 0
        %1349 = vmatmul.mubr.bf16.gmra.mrb[0].mxu0 %v709
        %v1350 = vpop.f32.mrb[0].mxu0
        %v1351 = vadd.f32 %v1302, %v1350
        %v1352 = vpop.f32.mrb[0].mxu0
        %v1353 = vpop.f32.mrb[0].mxu0
        %v1354 = vpop.f32.mrb[0].mxu0
        %1355 = vdwg.mxu0
        %s1356 = scalar_lea.vmem %s5, 32
        %v1357 = vld [vmem:[%s1356] sm:$0xf]
        %v1358 = vld [vmem:[%s1356 + $0x4] sm:$0xf]
        %v1359 = vld [vmem:[%s1356 + $0x8] sm:$0xf]
        %v1360 = vld [vmem:[%s1356 + $0xc] sm:$0xf]
        %s1361 = scalar_lea.vmem %s6, 2
        %v1362 = vld [vmem:[%s1361] sm:$0x1]
        %v1364 = vlaneseq
        %v1365 = vshrl.u32 %v1364, 7
        %v1366 = vsub.s32 0, %v1365
        %v1367 = vrot.slane %v1362, %v1366
        %v1373 = vunpack.c.l.b16 %v1357
        %v1374 = vunpack.c.l.b16 %v1358
        %v1375 = vunpack.c.l.b16 %v1359
        %v1376 = vunpack.c.l.b16 %v1360
        %v1377 = vpack.c.b16 %v1374, %v1373
        %v1378 = vpack.c.b16 %v1376, %v1375
        %1381 = vmatprep.subr.bf16.mxu0 0
        %1382 = vmatpush1.bf16.msra.mxu0 %v1377
        %1383 = vmatprep.subr.bf16.mxu0 0
        %1384 = vmatpush1.bf16.msra.mxu0 %v1378
        %1385 = vmatprep.subr.bf16.mxu0 0
        %1386 = vmatpush1.bf16.msra.mxu0 0
        %1387 = vmatprep.subr.bf16.mxu0 0
        %1388 = vmatpush1.bf16.msra.mxu0 0
        %1389 = vmatprep.subr.bf16.mxu0 0
        %1390 = vmatpush1.bf16.msra.mxu0 0
        %1391 = vmatprep.subr.bf16.mxu0 0
        %1392 = vmatpush1.bf16.msra.mxu0 0
        %1393 = vmatprep.subr.bf16.mxu0 0
        %1394 = vmatpush1.bf16.msra.mxu0 0
        %1395 = vmatprep.subr.bf16.mxu0 0
        %1396 = vmatpush1.bf16.msra.mxu0 0
        %1397 = vmatprep.subr.bf16.mxu0 0
        %1398 = vmatpush1.bf16.msra.mxu0 0
        %1399 = vmatprep.subr.bf16.mxu0 0
        %1400 = vmatpush1.bf16.msra.mxu0 0
        %1401 = vmatprep.subr.bf16.mxu0 0
        %1402 = vmatpush1.bf16.msra.mxu0 0
        %1403 = vmatprep.subr.bf16.mxu0 0
        %1404 = vmatpush1.bf16.msra.mxu0 0
        %1405 = vmatprep.subr.bf16.mxu0 0
        %1406 = vmatpush1.bf16.msra.mxu0 0
        %1407 = vmatprep.subr.bf16.mxu0 0
        %1408 = vmatpush1.bf16.msra.mxu0 0
        %1409 = vmatprep.subr.bf16.mxu0 0
        %1410 = vmatpush1.bf16.msra.mxu0 0
        %1411 = vmatprep.subr.bf16.mxu0 0
        %1412 = vmatpush1.bf16.msra.mxu0 0
        %1413 = vmatprep.mubr.bf16.mxu0 0
        %1414 = vmatmul.mubr.bf16.gmra.mrb[0].mxu0 %v775
        %v1415 = vpop.f32.mrb[0].mxu0
        %v1416 = vadd.f32 %v1367, %v1415
        %v1417 = vpop.f32.mrb[0].mxu0
        %v1418 = vpop.f32.mrb[0].mxu0
        %v1419 = vadd.f32 %v1367, %v1418
        %v1420 = vpop.f32.mrb[0].mxu0
        %1421 = vdwg.mxu0
        %s1422 = scalar_lea.vmem %s7, 32
        %v1423 = vld [vmem:[%s1422] sm:$0xf]
        %v1424 = vld [vmem:[%s1422 + $0x4] sm:$0xf]
        %v1425 = vld [vmem:[%s1422 + $0x8] sm:$0xf]
        %v1426 = vld [vmem:[%s1422 + $0xc] sm:$0xf]
        %s1427 = scalar_lea.vmem %s8, 2
        %v1428 = vld [vmem:[%s1427] sm:$0x1]
        %v1430 = vlaneseq
        %v1431 = vshrl.u32 %v1430, 7
        %v1432 = vsub.s32 0, %v1431
        %v1433 = vrot.slane %v1428, %v1432
        %v1439 = vunpack.c.l.b16 %v1423
        %v1440 = vunpack.c.l.b16 %v1424
        %v1441 = vunpack.c.l.b16 %v1425
        %v1442 = vunpack.c.l.b16 %v1426
        %v1443 = vpack.c.b16 %v1440, %v1439
        %v1444 = vpack.c.b16 %v1442, %v1441
        %1447 = vmatprep.subr.bf16.mxu0 0
        %1448 = vmatpush1.bf16.msra.mxu0 %v1443
        %1449 = vmatprep.subr.bf16.mxu0 0
        %1450 = vmatpush1.bf16.msra.mxu0 %v1444
        %1451 = vmatprep.subr.bf16.mxu0 0
        %1452 = vmatpush1.bf16.msra.mxu0 0
        %1453 = vmatprep.subr.bf16.mxu0 0
        %1454 = vmatpush1.bf16.msra.mxu0 0
        %1455 = vmatprep.subr.bf16.mxu0 0
        %1456 = vmatpush1.bf16.msra.mxu0 0
        %1457 = vmatprep.subr.bf16.mxu0 0
        %1458 = vmatpush1.bf16.msra.mxu0 0
        %1459 = vmatprep.subr.bf16.mxu0 0
        %1460 = vmatpush1.bf16.msra.mxu0 0
        %1461 = vmatprep.subr.bf16.mxu0 0
        %1462 = vmatpush1.bf16.msra.mxu0 0
        %1463 = vmatprep.subr.bf16.mxu0 0
        %1464 = vmatpush1.bf16.msra.mxu0 0
        %1465 = vmatprep.subr.bf16.mxu0 0
        %1466 = vmatpush1.bf16.msra.mxu0 0
        %1467 = vmatprep.subr.bf16.mxu0 0
        %1468 = vmatpush1.bf16.msra.mxu0 0
        %1469 = vmatprep.subr.bf16.mxu0 0
        %1470 = vmatpush1.bf16.msra.mxu0 0
        %1471 = vmatprep.subr.bf16.mxu0 0
        %1472 = vmatpush1.bf16.msra.mxu0 0
        %1473 = vmatprep.subr.bf16.mxu0 0
        %1474 = vmatpush1.bf16.msra.mxu0 0
        %1475 = vmatprep.subr.bf16.mxu0 0
        %1476 = vmatpush1.bf16.msra.mxu0 0
        %1477 = vmatprep.subr.bf16.mxu0 0
        %1478 = vmatpush1.bf16.msra.mxu0 0
        %1479 = vmatprep.mubr.bf16.mxu0 0
        %1480 = vmatmul.mubr.bf16.gmra.mrb[0].mxu0 %v775
        %v1481 = vpop.f32.mrb[0].mxu0
        %v1482 = vadd.f32 %v1433, %v1481
        %v1483 = vpop.f32.mrb[0].mxu0
        %v1484 = vpop.f32.mrb[0].mxu0
        %v1485 = vadd.f32 %v1433, %v1484
        %v1486 = vpop.f32.mrb[0].mxu0
        %1487 = vdwg.mxu0
        %v1488 = vmul.f32 %v1351, 0.35355338
        %v1489 = vpack.c.bf16 %v1488, %v1488
        %v1490 = vpack.c.bf16 %v1419, %v1416
        %v1492 = vsel %vm885, %v1489, 0
        %v1495 = vsel %vm885, %v1490, 0
        %1497 = vmatprep.subr.bf16.mxu0 0
        %1498 = vmatpush1.bf16.xpose.msra.mxu0 %v1495
        %1499 = vmatprep.subr.bf16.mxu0 0
        %1500 = vmatpush1.bf16.xpose.msra.mxu0 0
        %1501 = vmatprep.subr.bf16.mxu0 0
        %1502 = vmatpush1.bf16.xpose.msra.mxu0 0
        %1503 = vmatprep.subr.bf16.mxu0 0
        %1504 = vmatpush1.bf16.xpose.msra.mxu0 0
        %1505 = vmatprep.subr.bf16.mxu0 0
        %1506 = vmatpush1.bf16.xpose.msra.mxu0 0
        %1507 = vmatprep.subr.bf16.mxu0 0
        %1508 = vmatpush1.bf16.xpose.msra.mxu0 0
        %1509 = vmatprep.subr.bf16.mxu0 0
        %1510 = vmatpush1.bf16.xpose.msra.mxu0 0
        %1511 = vmatprep.subr.bf16.mxu0 0
        %1512 = vmatpush1.bf16.xpose.msra.mxu0 0
        %1513 = vmatprep.subr.bf16.mxu0 0
        %1514 = vmatpush1.bf16.xpose.msra.mxu0 0
        %1515 = vmatprep.subr.bf16.mxu0 0
        %1516 = vmatpush1.bf16.xpose.msra.mxu0 0
        %1517 = vmatprep.subr.bf16.mxu0 0
        %1518 = vmatpush1.bf16.xpose.msra.mxu0 0
        %1519 = vmatprep.subr.bf16.mxu0 0
        %1520 = vmatpush1.bf16.xpose.msra.mxu0 0
        %1521 = vmatprep.subr.bf16.mxu0 0
        %1522 = vmatpush1.bf16.xpose.msra.mxu0 0
        %1523 = vmatprep.subr.bf16.mxu0 0
        %1524 = vmatpush1.bf16.xpose.msra.mxu0 0
        %1525 = vmatprep.subr.bf16.mxu0 0
        %1526 = vmatpush1.bf16.xpose.msra.mxu0 0
        %1527 = vmatprep.subr.bf16.mxu0 0
        %1528 = vmatpush1.bf16.xpose.msra.mxu0 0
        %1529 = vmatprep.mubr.bf16.mxu0 0
        %1530 = vmatmul.mubr.bf16.gmra.mrb[0].mxu0 %v1492
        %v1531 = vpop.f32.mrb[0].mxu0
        %v1532 = vadd.f32 %v683, %v1531
        %v1533 = vpop.f32.mrb[0].mxu0
        %v1534 = vpop.f32.mrb[0].mxu0
        %v1535 = vpop.f32.mrb[0].mxu0
        %1536 = vdwg.mxu0
        %v1537 = vsel %vm932, %v1532, -inf
        %1538 = vmax.xlane.f32.xlu0 %v1537
        %v1539 = vpop.xlane.xlu0 %1538
        %v1540 = vsub.f32 %v1532, %v1539
        %v1541 = vmul.f32 %v1540, 1.442695
        %v1542 = vpow.pop %v1541
        %v1543 = vsel %vm932, %v1542, 0.0
        %1544 = vadd.xlane.f32.xlu0 %v1543
        %v1545 = vpop.xlane.xlu0 %1544
        %v1546 = vrcp.pop %v1545
        %v1547 = vmul.f32 %v1542, %v1546
        %v1548 = vpack.c.bf16 %v1547, %v1547
        %v1549 = vpack.c.bf16 %v1485, %v1482
        %v1551 = vsel %vm932, %v1548, 0
        %1553 = vmatprep.subr.bf16.mxu0 0
        %1554 = vmatpush1.bf16.msra.mxu0 %v1549
        %1555 = vmatprep.subr.bf16.mxu0 0
        %1556 = vmatpush1.bf16.msra.mxu0 0
        %1557 = vmatprep.subr.bf16.mxu0 0
        %1558 = vmatpush1.bf16.msra.mxu0 0
        %1559 = vmatprep.subr.bf16.mxu0 0
        %1560 = vmatpush1.bf16.msra.mxu0 0
        %1561 = vmatprep.subr.bf16.mxu0 0
        %1562 = vmatpush1.bf16.msra.mxu0 0
        %1563 = vmatprep.subr.bf16.mxu0 0
        %1564 = vmatpush1.bf16.msra.mxu0 0
        %1565 = vmatprep.subr.bf16.mxu0 0
        %1566 = vmatpush1.bf16.msra.mxu0 0
        %1567 = vmatprep.subr.bf16.mxu0 0
        %1568 = vmatpush1.bf16.msra.mxu0 0
        %1569 = vmatprep.subr.bf16.mxu0 0
        %1570 = vmatpush1.bf16.msra.mxu0 0
        %1571 = vmatprep.subr.bf16.mxu0 0
        %1572 = vmatpush1.bf16.msra.mxu0 0
        %1573 = vmatprep.subr.bf16.mxu0 0
        %1574 = vmatpush1.bf16.msra.mxu0 0
        %1575 = vmatprep.subr.bf16.mxu0 0
        %1576 = vmatpush1.bf16.msra.mxu0 0
        %1577 = vmatprep.subr.bf16.mxu0 0
        %1578 = vmatpush1.bf16.msra.mxu0 0
        %1579 = vmatprep.subr.bf16.mxu0 0
        %1580 = vmatpush1.bf16.msra.mxu0 0
        %1581 = vmatprep.subr.bf16.mxu0 0
        %1582 = vmatpush1.bf16.msra.mxu0 0
        %1583 = vmatprep.subr.bf16.mxu0 0
        %1584 = vmatpush1.bf16.msra.mxu0 0
        %1585 = vmatprep.mubr.bf16.mxu0 0
        %1586 = vmatmul.mubr.bf16.gmra.mrb[0].mxu0 %v1551
        %v1587 = vpop.f32.mrb[0].mxu0
        %v1588 = vadd.f32 0.0, %v1587
        %v1589 = vpop.f32.mrb[0].mxu0
        %v1590 = vpop.f32.mrb[0].mxu0
        %v1591 = vpop.f32.mrb[0].mxu0
        %1592 = vdwg.mxu0
        %s1593 = scalar_lea.vmem %s3, 48
        %v1594 = vld [vmem:[%s1593] sm:$0xf]
        %v1595 = vld [vmem:[%s1593 + $0x4] sm:$0xf]
        %v1596 = vld [vmem:[%s1593 + $0x8] sm:$0xf]
        %v1597 = vld [vmem:[%s1593 + $0xc] sm:$0xf]
        %s1598 = scalar_lea.vmem %s4, 3
        %v1599 = vld [vmem:[%s1598] sm:$0x1]
        %v1601 = vlaneseq
        %v1602 = vshrl.u32 %v1601, 7
        %v1603 = vsub.s32 0, %v1602
        %v1604 = vrot.slane %v1599, %v1603
        %v1610 = vunpack.c.l.b16 %v1594
        %v1611 = vunpack.c.l.b16 %v1595
        %v1612 = vunpack.c.l.b16 %v1596
        %v1613 = vunpack.c.l.b16 %v1597
        %v1614 = vpack.c.b16 %v1611, %v1610
        %v1615 = vpack.c.b16 %v1613, %v1612
        %1618 = vmatprep.subr.bf16.mxu0 0
        %1619 = vmatpush1.bf16.msra.mxu0 %v1614
        %1620 = vmatprep.subr.bf16.mxu0 0
        %1621 = vmatpush1.bf16.msra.mxu0 %v1615
        %1622 = vmatprep.subr.bf16.mxu0 0
        %1623 = vmatpush1.bf16.msra.mxu0 0
        %1624 = vmatprep.subr.bf16.mxu0 0
        %1625 = vmatpush1.bf16.msra.mxu0 0
        %1626 = vmatprep.subr.bf16.mxu0 0
        %1627 = vmatpush1.bf16.msra.mxu0 0
        %1628 = vmatprep.subr.bf16.mxu0 0
        %1629 = vmatpush1.bf16.msra.mxu0 0
        %1630 = vmatprep.subr.bf16.mxu0 0
        %1631 = vmatpush1.bf16.msra.mxu0 0
        %1632 = vmatprep.subr.bf16.mxu0 0
        %1633 = vmatpush1.bf16.msra.mxu0 0
        %1634 = vmatprep.subr.bf16.mxu0 0
        %1635 = vmatpush1.bf16.msra.mxu0 0
        %1636 = vmatprep.subr.bf16.mxu0 0
        %1637 = vmatpush1.bf16.msra.mxu0 0
        %1638 = vmatprep.subr.bf16.mxu0 0
        %1639 = vmatpush1.bf16.msra.mxu0 0
        %1640 = vmatprep.subr.bf16.mxu0 0
        %1641 = vmatpush1.bf16.msra.mxu0 0
        %1642 = vmatprep.subr.bf16.mxu0 0
        %1643 = vmatpush1.bf16.msra.mxu0 0
        %1644 = vmatprep.subr.bf16.mxu0 0
        %1645 = vmatpush1.bf16.msra.mxu0 0
        %1646 = vmatprep.subr.bf16.mxu0 0
        %1647 = vmatpush1.bf16.msra.mxu0 0
        %1648 = vmatprep.subr.bf16.mxu0 0
        %1649 = vmatpush1.bf16.msra.mxu0 0
        %1650 = vmatprep.mubr.bf16.mxu0 0
        %1651 = vmatmul.mubr.bf16.gmra.mrb[0].mxu0 %v709
        %v1652 = vpop.f32.mrb[0].mxu0
        %v1653 = vadd.f32 %v1604, %v1652
        %v1654 = vpop.f32.mrb[0].mxu0
        %v1655 = vpop.f32.mrb[0].mxu0
        %v1656 = vpop.f32.mrb[0].mxu0
        %1657 = vdwg.mxu0
        %s1658 = scalar_lea.vmem %s5, 48
        %v1659 = vld [vmem:[%s1658] sm:$0xf]
        %v1660 = vld [vmem:[%s1658 + $0x4] sm:$0xf]
        %v1661 = vld [vmem:[%s1658 + $0x8] sm:$0xf]
        %v1662 = vld [vmem:[%s1658 + $0xc] sm:$0xf]
        %s1663 = scalar_lea.vmem %s6, 3
        %v1664 = vld [vmem:[%s1663] sm:$0x1]
        %v1666 = vlaneseq
        %v1667 = vshrl.u32 %v1666, 7
        %v1668 = vsub.s32 0, %v1667
        %v1669 = vrot.slane %v1664, %v1668
        %v1675 = vunpack.c.l.b16 %v1659
        %v1676 = vunpack.c.l.b16 %v1660
        %v1677 = vunpack.c.l.b16 %v1661
        %v1678 = vunpack.c.l.b16 %v1662
        %v1679 = vpack.c.b16 %v1676, %v1675
        %v1680 = vpack.c.b16 %v1678, %v1677
        %1683 = vmatprep.subr.bf16.mxu0 0
        %1684 = vmatpush1.bf16.msra.mxu0 %v1679
        %1685 = vmatprep.subr.bf16.mxu0 0
        %1686 = vmatpush1.bf16.msra.mxu0 %v1680
        %1687 = vmatprep.subr.bf16.mxu0 0
        %1688 = vmatpush1.bf16.msra.mxu0 0
        %1689 = vmatprep.subr.bf16.mxu0 0
        %1690 = vmatpush1.bf16.msra.mxu0 0
        %1691 = vmatprep.subr.bf16.mxu0 0
        %1692 = vmatpush1.bf16.msra.mxu0 0
        %1693 = vmatprep.subr.bf16.mxu0 0
        %1694 = vmatpush1.bf16.msra.mxu0 0
        %1695 = vmatprep.subr.bf16.mxu0 0
        %1696 = vmatpush1.bf16.msra.mxu0 0
        %1697 = vmatprep.subr.bf16.mxu0 0
        %1698 = vmatpush1.bf16.msra.mxu0 0
        %1699 = vmatprep.subr.bf16.mxu0 0
        %1700 = vmatpush1.bf16.msra.mxu0 0
        %1701 = vmatprep.subr.bf16.mxu0 0
        %1702 = vmatpush1.bf16.msra.mxu0 0
        %1703 = vmatprep.subr.bf16.mxu0 0
        %1704 = vmatpush1.bf16.msra.mxu0 0
        %1705 = vmatprep.subr.bf16.mxu0 0
        %1706 = vmatpush1.bf16.msra.mxu0 0
        %1707 = vmatprep.subr.bf16.mxu0 0
        %1708 = vmatpush1.bf16.msra.mxu0 0
        %1709 = vmatprep.subr.bf16.mxu0 0
        %1710 = vmatpush1.bf16.msra.mxu0 0
        %1711 = vmatprep.subr.bf16.mxu0 0
        %1712 = vmatpush1.bf16.msra.mxu0 0
        %1713 = vmatprep.subr.bf16.mxu0 0
        %1714 = vmatpush1.bf16.msra.mxu0 0
        %1715 = vmatprep.mubr.bf16.mxu0 0
        %1716 = vmatmul.mubr.bf16.gmra.mrb[0].mxu0 %v775
        %v1717 = vpop.f32.mrb[0].mxu0
        %v1718 = vadd.f32 %v1669, %v1717
        %v1719 = vpop.f32.mrb[0].mxu0
        %v1720 = vpop.f32.mrb[0].mxu0
        %v1721 = vadd.f32 %v1669, %v1720
        %v1722 = vpop.f32.mrb[0].mxu0
        %1723 = vdwg.mxu0
        %s1724 = scalar_lea.vmem %s7, 48
        %v1725 = vld [vmem:[%s1724] sm:$0xf]
        %v1726 = vld [vmem:[%s1724 + $0x4] sm:$0xf]
        %v1727 = vld [vmem:[%s1724 + $0x8] sm:$0xf]
        %v1728 = vld [vmem:[%s1724 + $0xc] sm:$0xf]
        %s1729 = scalar_lea.vmem %s8, 3
        %v1730 = vld [vmem:[%s1729] sm:$0x1]
        %v1732 = vlaneseq
        %v1733 = vshrl.u32 %v1732, 7
        %v1734 = vsub.s32 0, %v1733
        %v1735 = vrot.slane %v1730, %v1734
        %v1741 = vunpack.c.l.b16 %v1725
        %v1742 = vunpack.c.l.b16 %v1726
        %v1743 = vunpack.c.l.b16 %v1727
        %v1744 = vunpack.c.l.b16 %v1728
        %v1745 = vpack.c.b16 %v1742, %v1741
        %v1746 = vpack.c.b16 %v1744, %v1743
        %1749 = vmatprep.subr.bf16.mxu0 0
        %1750 = vmatpush1.bf16.msra.mxu0 %v1745
        %1751 = vmatprep.subr.bf16.mxu0 0
        %1752 = vmatpush1.bf16.msra.mxu0 %v1746
        %1753 = vmatprep.subr.bf16.mxu0 0
        %1754 = vmatpush1.bf16.msra.mxu0 0
        %1755 = vmatprep.subr.bf16.mxu0 0
        %1756 = vmatpush1.bf16.msra.mxu0 0
        %1757 = vmatprep.subr.bf16.mxu0 0
        %1758 = vmatpush1.bf16.msra.mxu0 0
        %1759 = vmatprep.subr.bf16.mxu0 0
        %1760 = vmatpush1.bf16.msra.mxu0 0
        %1761 = vmatprep.subr.bf16.mxu0 0
        %1762 = vmatpush1.bf16.msra.mxu0 0
        %1763 = vmatprep.subr.bf16.mxu0 0
        %1764 = vmatpush1.bf16.msra.mxu0 0
        %1765 = vmatprep.subr.bf16.mxu0 0
        %1766 = vmatpush1.bf16.msra.mxu0 0
        %1767 = vmatprep.subr.bf16.mxu0 0
        %1768 = vmatpush1.bf16.msra.mxu0 0
        %1769 = vmatprep.subr.bf16.mxu0 0
        %1770 = vmatpush1.bf16.msra.mxu0 0
        %1771 = vmatprep.subr.bf16.mxu0 0
        %1772 = vmatpush1.bf16.msra.mxu0 0
        %1773 = vmatprep.subr.bf16.mxu0 0
        %1774 = vmatpush1.bf16.msra.mxu0 0
        %1775 = vmatprep.subr.bf16.mxu0 0
        %1776 = vmatpush1.bf16.msra.mxu0 0
        %1777 = vmatprep.subr.bf16.mxu0 0
        %1778 = vmatpush1.bf16.msra.mxu0 0
        %1779 = vmatprep.subr.bf16.mxu0 0
        %1780 = vmatpush1.bf16.msra.mxu0 0
        %1781 = vmatprep.mubr.bf16.mxu0 0
        %1782 = vmatmul.mubr.bf16.gmra.mrb[0].mxu0 %v775
        %v1783 = vpop.f32.mrb[0].mxu0
        %v1784 = vadd.f32 %v1735, %v1783
        %v1785 = vpop.f32.mrb[0].mxu0
        %v1786 = vpop.f32.mrb[0].mxu0
        %v1787 = vadd.f32 %v1735, %v1786
        %v1788 = vpop.f32.mrb[0].mxu0
        %1789 = vdwg.mxu0
        %v1790 = vmul.f32 %v1653, 0.35355338
        %v1791 = vpack.c.bf16 %v1790, %v1790
        %v1792 = vpack.c.bf16 %v1721, %v1718
        %v1794 = vsel %vm885, %v1791, 0
        %v1797 = vsel %vm885, %v1792, 0
        %1799 = vmatprep.subr.bf16.mxu0 0
        %1800 = vmatpush1.bf16.xpose.msra.mxu0 %v1797
        %1801 = vmatprep.subr.bf16.mxu0 0
        %1802 = vmatpush1.bf16.xpose.msra.mxu0 0
        %1803 = vmatprep.subr.bf16.mxu0 0
        %1804 = vmatpush1.bf16.xpose.msra.mxu0 0
        %1805 = vmatprep.subr.bf16.mxu0 0
        %1806 = vmatpush1.bf16.xpose.msra.mxu0 0
        %1807 = vmatprep.subr.bf16.mxu0 0
        %1808 = vmatpush1.bf16.xpose.msra.mxu0 0
        %1809 = vmatprep.subr.bf16.mxu0 0
        %1810 = vmatpush1.bf16.xpose.msra.mxu0 0
        %1811 = vmatprep.subr.bf16.mxu0 0
        %1812 = vmatpush1.bf16.xpose.msra.mxu0 0
        %1813 = vmatprep.subr.bf16.mxu0 0
        %1814 = vmatpush1.bf16.xpose.msra.mxu0 0
        %1815 = vmatprep.subr.bf16.mxu0 0
        %1816 = vmatpush1.bf16.xpose.msra.mxu0 0
        %1817 = vmatprep.subr.bf16.mxu0 0
        %1818 = vmatpush1.bf16.xpose.msra.mxu0 0
        %1819 = vmatprep.subr.bf16.mxu0 0
        %1820 = vmatpush1.bf16.xpose.msra.mxu0 0
        %1821 = vmatprep.subr.bf16.mxu0 0
        %1822 = vmatpush1.bf16.xpose.msra.mxu0 0
        %1823 = vmatprep.subr.bf16.mxu0 0
        %1824 = vmatpush1.bf16.xpose.msra.mxu0 0
        %1825 = vmatprep.subr.bf16.mxu0 0
        %1826 = vmatpush1.bf16.xpose.msra.mxu0 0
        %1827 = vmatprep.subr.bf16.mxu0 0
        %1828 = vmatpush1.bf16.xpose.msra.mxu0 0
        %1829 = vmatprep.subr.bf16.mxu0 0
        %1830 = vmatpush1.bf16.xpose.msra.mxu0 0
        %1831 = vmatprep.mubr.bf16.mxu0 0
        %1832 = vmatmul.mubr.bf16.gmra.mrb[0].mxu0 %v1794
        %v1833 = vpop.f32.mrb[0].mxu0
        %v1834 = vadd.f32 %v683, %v1833
        %v1835 = vpop.f32.mrb[0].mxu0
        %v1836 = vpop.f32.mrb[0].mxu0
        %v1837 = vpop.f32.mrb[0].mxu0
        %1838 = vdwg.mxu0
        %v1839 = vsel %vm932, %v1834, -inf
        %1840 = vmax.xlane.f32.xlu0 %v1839
        %v1841 = vpop.xlane.xlu0 %1840
        %v1842 = vsub.f32 %v1834, %v1841
        %v1843 = vmul.f32 %v1842, 1.442695
        %v1844 = vpow.pop %v1843
        %v1845 = vsel %vm932, %v1844, 0.0
        %1846 = vadd.xlane.f32.xlu0 %v1845
        %v1847 = vpop.xlane.xlu0 %1846
        %v1848 = vrcp.pop %v1847
        %v1849 = vmul.f32 %v1844, %v1848
        %v1850 = vpack.c.bf16 %v1849, %v1849
        %v1851 = vpack.c.bf16 %v1787, %v1784
        %v1853 = vsel %vm932, %v1850, 0
        %1855 = vmatprep.subr.bf16.mxu0 0
        %1856 = vmatpush1.bf16.msra.mxu0 %v1851
        %1857 = vmatprep.subr.bf16.mxu0 0
        %1858 = vmatpush1.bf16.msra.mxu0 0
        %1859 = vmatprep.subr.bf16.mxu0 0
        %1860 = vmatpush1.bf16.msra.mxu0 0
        %1861 = vmatprep.subr.bf16.mxu0 0
        %1862 = vmatpush1.bf16.msra.mxu0 0
        %1863 = vmatprep.subr.bf16.mxu0 0
        %1864 = vmatpush1.bf16.msra.mxu0 0
        %1865 = vmatprep.subr.bf16.mxu0 0
        %1866 = vmatpush1.bf16.msra.mxu0 0
        %1867 = vmatprep.subr.bf16.mxu0 0
        %1868 = vmatpush1.bf16.msra.mxu0 0
        %1869 = vmatprep.subr.bf16.mxu0 0
        %1870 = vmatpush1.bf16.msra.mxu0 0
        %1871 = vmatprep.subr.bf16.mxu0 0
        %1872 = vmatpush1.bf16.msra.mxu0 0
        %1873 = vmatprep.subr.bf16.mxu0 0
        %1874 = vmatpush1.bf16.msra.mxu0 0
        %1875 = vmatprep.subr.bf16.mxu0 0
        %1876 = vmatpush1.bf16.msra.mxu0 0
        %1877 = vmatprep.subr.bf16.mxu0 0
        %1878 = vmatpush1.bf16.msra.mxu0 0
        %1879 = vmatprep.subr.bf16.mxu0 0
        %1880 = vmatpush1.bf16.msra.mxu0 0
        %1881 = vmatprep.subr.bf16.mxu0 0
        %1882 = vmatpush1.bf16.msra.mxu0 0
        %1883 = vmatprep.subr.bf16.mxu0 0
        %1884 = vmatpush1.bf16.msra.mxu0 0
        %1885 = vmatprep.subr.bf16.mxu0 0
        %1886 = vmatpush1.bf16.msra.mxu0 0
        %1887 = vmatprep.mubr.bf16.mxu0 0
        %1888 = vmatmul.mubr.bf16.gmra.mrb[0].mxu0 %v1853
        %v1889 = vpop.f32.mrb[0].mxu0
        %v1890 = vadd.f32 0.0, %v1889
        %v1891 = vpop.f32.mrb[0].mxu0
        %v1892 = vpop.f32.mrb[0].mxu0
        %v1893 = vpop.f32.mrb[0].mxu0
        %1894 = vdwg.mxu0
        %1896 = vrot.lane.b32.xlu0 %v1286, 8
        %v1897 = vpop.permute.xlu0 %1896
        %1900 = vrot.lane.b32.xlu0 %v1588, 16
        %v1901 = vpop.permute.xlu0 %1900
        %1904 = vrot.lane.b32.xlu0 %v1890, 24
        %v1905 = vpop.permute.xlu0 %1904
        %v1907 = vsel %vm885, %v984, %v1897
        %v1908 = vsel %vm932, %v1907, %v1901
        %vm1909 = vcmask 195584
        %v1910 = vsel %vm1909, %v1908, %v1905
        %v1911 = vpack.c.bf16 %v1910, %v1910
        %v1912 = vld [vmem:[%s9] sm:$0xf]
        %v1913 = vld [vmem:[%s9 + $0x4] sm:$0xf]
        %v1914 = vld [vmem:[%s9 + $0x8] sm:$0xf]
        %v1915 = vld [vmem:[%s9 + $0xc] sm:$0xf]
        %v1916 = vld [vmem:[%s10] sm:$0x1]
        %v1918 = vlaneseq
        %v1919 = vshrl.u32 %v1918, 7
        %v1920 = vsub.s32 0, %v1919
        %v1921 = vrot.slane %v1916, %v1920
        %v1927 = vunpack.c.l.b16 %v1912
        %v1928 = vunpack.c.l.b16 %v1913
        %v1929 = vunpack.c.l.b16 %v1914
        %v1930 = vunpack.c.l.b16 %v1915
        %v1931 = vpack.c.b16 %v1928, %v1927
        %v1932 = vpack.c.b16 %v1930, %v1929
        %v1936 = vsel %vm707, %v1911, 0
        %1938 = vmatprep.subr.bf16.mxu0 0
        %1939 = vmatpush1.bf16.msra.mxu0 %v1931
        %1940 = vmatprep.subr.bf16.mxu0 0
        %1941 = vmatpush1.bf16.msra.mxu0 %v1932
        %1942 = vmatprep.subr.bf16.mxu0 0
        %1943 = vmatpush1.bf16.msra.mxu0 0
        %1944 = vmatprep.subr.bf16.mxu0 0
        %1945 = vmatpush1.bf16.msra.mxu0 0
        %1946 = vmatprep.subr.bf16.mxu0 0
        %1947 = vmatpush1.bf16.msra.mxu0 0
        %1948 = vmatprep.subr.bf16.mxu0 0
        %1949 = vmatpush1.bf16.msra.mxu0 0
        %1950 = vmatprep.subr.bf16.mxu0 0
        %1951 = vmatpush1.bf16.msra.mxu0 0
        %1952 = vmatprep.subr.bf16.mxu0 0
        %1953 = vmatpush1.bf16.msra.mxu0 0
        %1954 = vmatprep.subr.bf16.mxu0 0
        %1955 = vmatpush1.bf16.msra.mxu0 0
        %1956 = vmatprep.subr.bf16.mxu0 0
        %1957 = vmatpush1.bf16.msra.mxu0 0
        %1958 = vmatprep.subr.bf16.mxu0 0
        %1959 = vmatpush1.bf16.msra.mxu0 0
        %1960 = vmatprep.subr.bf16.mxu0 0
        %1961 = vmatpush1.bf16.msra.mxu0 0
        %1962 = vmatprep.subr.bf16.mxu0 0
        %1963 = vmatpush1.bf16.msra.mxu0 0
        %1964 = vmatprep.subr.bf16.mxu0 0
        %1965 = vmatpush1.bf16.msra.mxu0 0
        %1966 = vmatprep.subr.bf16.mxu0 0
        %1967 = vmatpush1.bf16.msra.mxu0 0
        %1968 = vmatprep.subr.bf16.mxu0 0
        %1969 = vmatpush1.bf16.msra.mxu0 0
        %1970 = vmatprep.mubr.bf16.mxu0 0
        %1971 = vmatmul.mubr.bf16.gmra.mrb[0].mxu0 %v1936
        %v1972 = vpop.f32.mrb[0].mxu0
        %v1973 = vadd.f32 %v1921, %v1972
        %v1974 = vpop.f32.mrb[0].mxu0
        %v1975 = vpop.f32.mrb[0].mxu0
        %v1976 = vpop.f32.mrb[0].mxu0
        %1977 = vdwg.mxu0
        %v1978 = vadd.f32 %v678, %v1973
        %v1979 = vld [vmem:[%s15] sm:$0x1]
        %v1980 = vld [vmem:[%s16] sm:$0x1]
        %v1981 = vsel %vm707, %v1978, 0.0
        %1982 = vadd.xlane.f32.xlu0 %v1981
        %v1983 = vpop.xlane.xlu0 %1982
        %v1984 = vrcp.pop 32.0
        %v1985 = vmul.f32 %v1983, %v1984
        %v1986 = vsub.f32 %v1978, %v1985
        %v1987 = vmul.f32 %v1986, %v1986
        %v1988 = vsel %vm707, %v1987, 0.0
        %1989 = vadd.xlane.f32.xlu0 %v1988
        %v1990 = vpop.xlane.xlu0 %1989
        %v1991 = vmul.f32 %v1990, %v1984
        %v1992 = vadd.f32 %v1991, 1e-05
        %v1993 = vrsqrt.pop %v1992
        %v1994 = vmul.f32 %v1986, %v1993
        %v1996 = vlaneseq
        %v1997 = vshrl.u32 %v1996, 7
        %v1998 = vsub.s32 0, %v1997
        %v1999 = vrot.slane %v1979, %v1998
        %v2001 = vmul.f32 %v1994, %v1999
        %v2003 = vlaneseq
        %v2004 = vshrl.u32 %v2003, 7
        %v2005 = vsub.s32 0, %v2004
        %v2006 = vrot.slane %v1980, %v2005
        %v2008 = vadd.f32 %v2001, %v2006
        %v2009 = vpack.c.bf16 %v2008, %v2008
        %v2010 = vld [vmem:[%s11] sm:$0xf]
        %v2011 = vld [vmem:[%s11 + $0x4] sm:$0xf]
        %v2012 = vld [vmem:[%s11 + $0x8] sm:$0xf]
        %v2013 = vld [vmem:[%s11 + $0xc] sm:$0xf]
        %v2014 = vld [vmem:[%s12] sm:$0x1]
        %v2016 = vlaneseq
        %v2017 = vshrl.u32 %v2016, 7
        %v2018 = vsub.s32 0, %v2017
        %v2019 = vrot.slane %v2014, %v2018
        %v2025 = vunpack.c.l.b16 %v2010
        %v2026 = vunpack.c.l.b16 %v2011
        %v2027 = vunpack.c.l.b16 %v2012
        %v2028 = vunpack.c.l.b16 %v2013
        %v2029 = vpack.c.b16 %v2026, %v2025
        %v2030 = vpack.c.b16 %v2028, %v2027
        %v2034 = vsel %vm707, %v2009, 0
        %2036 = vmatprep.subr.bf16.mxu0 0
        %2037 = vmatpush1.bf16.msra.mxu0 %v2029
        %2038 = vmatprep.subr.bf16.mxu0 0
        %2039 = vmatpush1.bf16.msra.mxu0 %v2030
        %2040 = vmatprep.subr.bf16.mxu0 0
        %2041 = vmatpush1.bf16.msra.mxu0 0
        %2042 = vmatprep.subr.bf16.mxu0 0
        %2043 = vmatpush1.bf16.msra.mxu0 0
        %2044 = vmatprep.subr.bf16.mxu0 0
        %2045 = vmatpush1.bf16.msra.mxu0 0
        %2046 = vmatprep.subr.bf16.mxu0 0
        %2047 = vmatpush1.bf16.msra.mxu0 0
        %2048 = vmatprep.subr.bf16.mxu0 0
        %2049 = vmatpush1.bf16.msra.mxu0 0
        %2050 = vmatprep.subr.bf16.mxu0 0
        %2051 = vmatpush1.bf16.msra.mxu0 0
        %2052 = vmatprep.subr.bf16.mxu0 0
        %2053 = vmatpush1.bf16.msra.mxu0 0
        %2054 = vmatprep.subr.bf16.mxu0 0
        %2055 = vmatpush1.bf16.msra.mxu0 0
        %2056 = vmatprep.subr.bf16.mxu0 0
        %2057 = vmatpush1.bf16.msra.mxu0 0
        %2058 = vmatprep.subr.bf16.mxu0 0
        %2059 = vmatpush1.bf16.msra.mxu0 0
        %2060 = vmatprep.subr.bf16.mxu0 0
        %2061 = vmatpush1.bf16.msra.mxu0 0
        %2062 = vmatprep.subr.bf16.mxu0 0
        %2063 = vmatpush1.bf16.msra.mxu0 0
        %2064 = vmatprep.subr.bf16.mxu0 0
        %2065 = vmatpush1.bf16.msra.mxu0 0
        %2066 = vmatprep.subr.bf16.mxu0 0
        %2067 = vmatpush1.bf16.msra.mxu0 0
        %2068 = vmatprep.mubr.bf16.mxu0 0
        %2069 = vmatmul.mubr.bf16.gmra.mrb[0].mxu0 %v2034
        %v2070 = vpop.f32.mrb[0].mxu0
        %v2071 = vadd.f32 %v2019, %v2070
        %v2072 = vpop.f32.mrb[0].mxu0
        %v2073 = vpop.f32.mrb[0].mxu0
        %v2074 = vpop.f32.mrb[0].mxu0
        %2075 = vdwg.mxu0
        %v2076 = vmax.f32 %v2071, 0.0
        %v2077 = vpack.c.bf16 %v2076, %v2076
        %v2078 = vld [vmem:[%s13] sm:$0xf]
        %v2079 = vld [vmem:[%s13 + $0x4] sm:$0xf]
        %v2080 = vld [vmem:[%s13 + $0x8] sm:$0xf]
        %v2081 = vld [vmem:[%s13 + $0xc] sm:$0xf]
        %v2082 = vld [vmem:[%s13 + $0x10] sm:$0xf]
        %v2083 = vld [vmem:[%s13 + $0x14] sm:$0xf]
        %v2084 = vld [vmem:[%s13 + $0x18] sm:$0xf]
        %v2085 = vld [vmem:[%s13 + $0x1c] sm:$0xf]
        %v2086 = vld [vmem:[%s14] sm:$0x1]
        %v2088 = vlaneseq
        %v2089 = vshrl.u32 %v2088, 7
        %v2090 = vsub.s32 0, %v2089
        %v2091 = vrot.slane %v2086, %v2090
        %v2101 = vunpack.c.l.b16 %v2078
        %v2102 = vunpack.c.l.b16 %v2079
        %v2103 = vunpack.c.l.b16 %v2080
        %v2104 = vunpack.c.l.b16 %v2081
        %v2105 = vunpack.c.l.b16 %v2082
        %v2106 = vunpack.c.l.b16 %v2083
        %v2107 = vunpack.c.l.b16 %v2084
        %v2108 = vunpack.c.l.b16 %v2085
        %v2109 = vpack.c.b16 %v2102, %v2101
        %v2110 = vpack.c.b16 %v2104, %v2103
        %v2111 = vpack.c.b16 %v2106, %v2105
        %v2112 = vpack.c.b16 %v2108, %v2107
        %vm2117 = vcmask 523264
        %v2119 = vsel %vm2117, %v2077, 0
        %2121 = vmatprep.subr.bf16.mxu0 0
        %2122 = vmatpush1.bf16.msra.mxu0 %v2109
        %2123 = vmatprep.subr.bf16.mxu0 0
        %2124 = vmatpush1.bf16.msra.mxu0 %v2110
        %2125 = vmatprep.subr.bf16.mxu0 0
        %2126 = vmatpush1.bf16.msra.mxu0 %v2111
        %2127 = vmatprep.subr.bf16.mxu0 0
        %2128 = vmatpush1.bf16.msra.mxu0 %v2112
        %2129 = vmatprep.subr.bf16.mxu0 0
        %2130 = vmatpush1.bf16.msra.mxu0 0
        %2131 = vmatprep.subr.bf16.mxu0 0
        %2132 = vmatpush1.bf16.msra.mxu0 0
        %2133 = vmatprep.subr.bf16.mxu0 0
        %2134 = vmatpush1.bf16.msra.mxu0 0
        %2135 = vmatprep.subr.bf16.mxu0 0
        %2136 = vmatpush1.bf16.msra.mxu0 0
        %2137 = vmatprep.subr.bf16.mxu0 0
        %2138 = vmatpush1.bf16.msra.mxu0 0
        %2139 = vmatprep.subr.bf16.mxu0 0
        %2140 = vmatpush1.bf16.msra.mxu0 0
        %2141 = vmatprep.subr.bf16.mxu0 0
        %2142 = vmatpush1.bf16.msra.mxu0 0
        %2143 = vmatprep.subr.bf16.mxu0 0
        %2144 = vmatpush1.bf16.msra.mxu0 0
        %2145 = vmatprep.subr.bf16.mxu0 0
        %2146 = vmatpush1.bf16.msra.mxu0 0
        %2147 = vmatprep.subr.bf16.mxu0 0
        %2148 = vmatpush1.bf16.msra.mxu0 0
        %2149 = vmatprep.subr.bf16.mxu0 0
        %2150 = vmatpush1.bf16.msra.mxu0 0
        %2151 = vmatprep.subr.bf16.mxu0 0
        %2152 = vmatpush1.bf16.msra.mxu0 0
        %2153 = vmatprep.mubr.bf16.mxu0 0
        %2154 = vmatmul.mubr.bf16.gmra.mrb[0].mxu0 %v2119
        %v2155 = vpop.f32.mrb[0].mxu0
        %v2156 = vadd.f32 %v2091, %v2155
        %v2157 = vpop.f32.mrb[0].mxu0
        %v2158 = vpop.f32.mrb[0].mxu0
        %v2159 = vpop.f32.mrb[0].mxu0
        %2160 = vdwg.mxu0
        %v2161 = vadd.f32 %v2008, %v2156
        %v2162 = vld [vmem:[%s17] sm:$0x1]
        %v2163 = vld [vmem:[%s18] sm:$0x1]
        %v2164 = vsel %vm707, %v2161, 0.0
        %2165 = vadd.xlane.f32.xlu0 %v2164
        %v2166 = vpop.xlane.xlu0 %2165
        %v2167 = vmul.f32 %v2166, %v1984
        %v2168 = vsub.f32 %v2161, %v2167
        %v2169 = vmul.f32 %v2168, %v2168
        %v2170 = vsel %vm707, %v2169, 0.0
        %2171 = vadd.xlane.f32.xlu0 %v2170
        %v2172 = vpop.xlane.xlu0 %2171
        %v2173 = vmul.f32 %v2172, %v1984
        %v2174 = vadd.f32 %v2173, 1e-05
        %v2175 = vrsqrt.pop %v2174
        %v2176 = vmul.f32 %v2168, %v2175
        %v2178 = vlaneseq
        %v2179 = vshrl.u32 %v2178, 7
        %v2180 = vsub.s32 0, %v2179
        %v2181 = vrot.slane %v2162, %v2180
        %v2183 = vmul.f32 %v2176, %v2181
        %v2185 = vlaneseq
        %v2186 = vshrl.u32 %v2185, 7
        %v2187 = vsub.s32 0, %v2186
        %v2188 = vrot.slane %v2163, %v2187
        %v2190 = vadd.f32 %v2183, %v2188
        %2191 = vst.msk [vmem:[%s655] sm:$0xff] %vm707, %v2190
        %s2192 = sand.u32 %s473, 1
        %s2193 = scalar_lea.sflag [#allocation3], %s2192
        %s2194 = sand.u32 %s473, 1
        %s2195 = smul.addr %s2194, 8
        %s2196 = scalar_lea.vmem [#allocation2], %s2195
        // Predicated region
        $region97: #{tpu_custom_call.1} parent=95 // pred_check
          %p2197 = pneg %p483
        $region98: #{tpu_custom_call.1} parent=95 // pred_check_branch
          %2199 = sbr.rel (%p2197) target = $region100
        $region99: #{tpu_custom_call.1} parent=95 // pred_region
          %s2201 = ssub.s32 128, 128
          %2202 = vsyncadd %s2193, %s2201
          %s2203 = smul.addr %s37, 2
          %s2204 = sadd.s32 %s38, %s2203
          %s2205 = smul.addr %s2204, 128
          %s2206 = scalar_lea.hbm %s19, %s2205
          %s2208 = sshll.u32 %s2196, 4
          %s2209 = int_to_ptr.vmem [resolvable:$true] %s2208
          %2211 = dma.vmem_to_hbm [thread:$0]  %s2209, 128, %s2206, %s2193
        $region100: #{tpu_custom_call.1} parent=95 // pred_fallthru
          _
      $region96: #{tpu_custom_call.1} parent=5 // pred_fallthru
        _
      %p2212 = scmp.le.s32.totalorder 2, %s28
      // Predicated region
      $region101: #{tpu_custom_call.1} parent=5 // pred_check
        %p2213 = pneg %p2212
      $region102: #{tpu_custom_call.1} parent=5 // pred_check_branch
        %2215 = sbr.rel (%p2213) target = $region104
      $region103: #{tpu_custom_call.1} parent=5 // pred_region
        %s2216 = ssub.s32 %s28, 2
        // Predicated region
        $region105: #{tpu_custom_call.1} parent=103 // pred_check
          %p2217 = pneg %p489
        $region106: #{tpu_custom_call.1} parent=103 // pred_check_branch
          %2219 = sbr.rel (%p2217) target = $region108
        $region107: #{tpu_custom_call.1} parent=103 // pred_region
          %s2220 = sand.u32 %s474, 1
          %s2221 = scalar_lea.sflag [#allocation3], %s2220
          %s2222 = sand.u32 %s474, 1
          %s2223 = smul.addr %s2222, 8
          %s2224 = scalar_lea.vmem [#allocation2], %s2223
          %2225 = dma.done %s2221, 128
        $region108: #{tpu_custom_call.1} parent=103 // pred_fallthru
          _
      $region104: #{tpu_custom_call.1} parent=5 // pred_fallthru
        _
    $region6: #{tpu_custom_call.1} parent=1 // loop_footer
      %s32 = sadd.s32 1, %s28
    $region7: #{tpu_custom_call.1} parent=1 // loop_footer_branch
      %27 = sbr.rel target = $region3
    $region8: #{tpu_custom_call.1} parent=1 // loop_exit
      _
    %2226 = vsyncpa [#allocation3], 1
    %s2227 = scalar_lea.sflag [#allocation3], 1
    %2228 = vsyncpa %s2227, 1

</llo_original>
